<compile_context>
chip_gen: v6e
topology: v6e:2x2x1
jax: 0.10.0
libtpu: 0.0.40
codegen_flags: <defaults>
</compile_context>

<pallas_src>
import jax
import jax.numpy as jnp
import numpy as np
from jax.experimental import pallas as pl
from jax.experimental.pallas import tpu as pltpu

GRID = 6            # self.grid_size
C_FEAT = 64         # backbone['p0'] channels (input of self.proj)
NT = 256            # point tile (raised from 128: amortize per-step overhead)
VT = 128            # voxel tile (keeps v7x megacore granularity + small scratch)
VMEM_LIMIT = 40 * 1024 * 1024

f32 = jnp.float32
bf16 = jnp.bfloat16


def _relu(z):
    return jnp.maximum(z, 0.0)


def _bdot(a, w_bf16):
    """bf16 x bf16 -> f32 MXU matmul (operands cast, f32 accumulation)."""
    return jnp.dot(a.astype(bf16), w_bf16, preferred_element_type=f32)


# --------------------------------------------------------------------------- #
# Shared math — used verbatim by the Pallas kernels AND the pure-JAX reference
# --------------------------------------------------------------------------- #
def _point_mlp_math(nc, feats, w_pe1, b_pe1, w_prp, w_pe2p, b_cat,
                    w_f1, b_f1, w_f2, b_f2):
    """pos_emb_layer + proj fused block-diagonally into fc_layer; returns bf16 pt_emb>=0."""
    h = _relu(jnp.dot(nc, w_pe1, preferred_element_type=f32) + b_pe1)          # [n,32]
    # block-diag fusion of proj / pos_emb_layer[1]: no lane-axis concatenate.
    x = _relu(jnp.dot(feats, w_prp, preferred_element_type=f32)
              + _bdot(h, w_pe2p) + b_cat)                                      # [n,64]
    x = _relu(_bdot(x, w_f1) + b_f1)
    x = _relu(_bdot(x, w_f2) + b_f2)                                           # [n,64] >=0
    return x.astype(bf16)


def _attn_math(voxel_embs, w_a1, b_a1, w_a2, b_a2):
    """attn_weight (ReLU + Sigmoid) and attention weighting; returns bf16."""
    a = _relu(_bdot(voxel_embs, w_a1) + b_a1)
    w = jax.nn.sigmoid(_bdot(a, w_a2) + b_a2)                                  # [v,1]
    return (w * voxel_embs).astype(bf16)


def _heads_math(box_feat, anchors, w_o, b_o, w_heads):
    """fc_out + packed iou|reg heads + dec_box -> single [B,32] lane slab."""
    o = _relu(_bdot(box_feat, w_o) + b_o)                                      # [B,32]
    hd = _bdot(o, w_heads)                                                     # [B,9]
    iou, regs = hd[:, 0:1], hd[:, 1:9]
    xa, ya, za = anchors[:, 0:1], anchors[:, 1:2], anchors[:, 2:3]
    wa, la, ha, ra = anchors[:, 3:4], anchors[:, 4:5], anchors[:, 5:6], anchors[:, 6:7]
    xt, yt, zt = regs[:, 0:1], regs[:, 1:2], regs[:, 2:3]
    wt, lt, ht = regs[:, 3:4], regs[:, 4:5], regs[:, 5:6]
    ct, st = regs[:, 6:7], regs[:, 7:8]
    diag = jnp.sqrt(la * la + wa * wa)
    dec = jnp.concatenate(
        [xt * diag + xa, yt * diag + ya, zt * ha + za,
         jnp.exp(wt) * wa, jnp.exp(lt) * la, jnp.exp(ht) * ha,
         ct + jnp.cos(ra), st + jnp.sin(ra)], axis=1)                          # [B,8]
    pad = jnp.zeros((hd.shape[0], 15), f32)
    return jnp.concatenate([iou, regs, dec, pad], axis=1)                      # [B,32]


# --------------------------------------------------------------------------- #
# Pallas kernels
# --------------------------------------------------------------------------- #
def point_mlp_kernel(nc_ref, ft_ref, w_pe1, b_pe1, w_prp, w_pe2p, b_cat,
                     w_f1, b_f1, w_f2, b_f2, pt_emb_ref):
    pt_emb_ref[...] = _point_mlp_math(
        nc_ref[...], ft_ref[...], w_pe1[...], b_pe1[...], w_prp[...],
        w_pe2p[...], b_cat[...], w_f1[...], b_f1[...], w_f2[...], b_f2[...])


def segmax_attn_kernel(mask_ref, pt_emb_ref, grid_pos_ref,
                       w_a1, b_a1, w_a2, b_a2, weighted_ref, acc_ref):
    n = pl.program_id(1)

    @pl.when(n == 0)
    def _():
        acc_ref[...] = jnp.zeros_like(acc_ref)

    # Segment-max over this N chunk.  pt_emb >= 0 (post-ReLU) so mask*pt_emb with
    # neutral element 0 replaces the -1e30 masked select / transpose / compares.
    # Peak intermediate: [VT, NT, 64] f32 (~8 MiB at NT=256).
    mask = mask_ref[...].astype(f32)                     # [VT, NT]  exact 0/1
    pe = pt_emb_ref[...].astype(f32)                     # [NT, 64]  channels on lanes
    contrib = mask[:, :, None] * pe[None, :, :]          # [VT, NT, 64]
    acc_ref[...] = jnp.maximum(acc_ref[...], jnp.max(contrib, axis=1))

    @pl.when(n == pl.num_programs(1) - 1)
    def _():
        voxel_embs = acc_ref[...] + grid_pos_ref[...]    # grid_emb positional add
        weighted_ref[...] = _attn_math(voxel_embs, w_a1[...], b_a1[...],
                                       w_a2[...], b_a2[...])


def scatter_heads_kernel(vox2box_ref, weighted_ref, anchors_ref,
                         w_o, b_o, w_heads, out_ref, box_acc_ref):
    v = pl.program_id(0)

    @pl.when(v == 0)
    def _():
        box_acc_ref[...] = jnp.zeros_like(box_acc_ref)

    # torch_scatter.scatter_add over voxel_idx as a bf16 one-hot MXU matmul,
    # accumulated in f32 across V tiles.
    box_acc_ref[...] += jnp.dot(vox2box_ref[...], weighted_ref[...],
                                preferred_element_type=f32)

    @pl.when(v == pl.num_programs(0) - 1)
    def _():
        out_ref[...] = _heads_math(box_acc_ref[...], anchors_ref[...],
                                   w_o[...], b_o[...], w_heads[...])


# --------------------------------------------------------------------------- #
# Deterministic parameter init (shapes from DetectionS2.__init__)
# --------------------------------------------------------------------------- #
def _linear(key, fan_in, fan_out, bias=True):
    kw, kb = jax.random.split(key)
    w = jax.random.normal(kw, (fan_in, fan_out), f32) / np.sqrt(fan_in)
    b = 0.01 * jax.random.normal(kb, (1, fan_out), f32) if bias else None
    return w, b


def init_params(key):
    ks = jax.random.split(key, 11)
    p = {}
    p["grid_emb"] = 0.3 * jax.random.normal(ks[0], (GRID, GRID, GRID, 64), f32)
    p["pe1"] = _linear(ks[1], 3, 32)
    p["pe2"] = _linear(ks[2], 32, 32)
    p["proj"] = _linear(ks[3], 64, 32)
    p["fc1"] = _linear(ks[4], 64, 64)
    p["fc2"] = _linear(ks[5], 64, 64)
    p["a1"] = _linear(ks[6], 64, 32)
    p["a2"] = _linear(ks[7], 32, 1)
    p["out"] = _linear(ks[8], 64, 32)
    p["iou"] = _linear(ks[9], 32, 1, bias=False)[0]
    p["reg"] = _linear(ks[10], 32, 8, bias=False)[0]
    return p


def prepare_kernel_params(p):
    """bf16 weights, block-diag fusion of proj + pos_emb_layer[1], packed heads."""
    w_pr, b_pr = p["proj"]
    w_pe2, b_pe2 = p["pe2"]
    w_prp = jnp.concatenate([w_pr, jnp.zeros((C_FEAT, 32), f32)], axis=1).astype(bf16)
    w_pe2p = jnp.concatenate([jnp.zeros((32, 32), f32), w_pe2], axis=1).astype(bf16)
    return dict(
        w_pe1=p["pe1"][0], b_pe1=p["pe1"][1],            # f32 (K=3, negligible)
        w_prp=w_prp, w_pe2p=w_pe2p,
        b_cat=jnp.concatenate([b_pr, b_pe2], axis=1),    # [1,64]
        w_f1=p["fc1"][0].astype(bf16), b_f1=p["fc1"][1],
        w_f2=p["fc2"][0].astype(bf16), b_f2=p["fc2"][1],
        w_a1=p["a1"][0].astype(bf16), b_a1=p["a1"][1],
        w_a2=p["a2"][0].astype(bf16), b_a2=p["a2"][1],
        w_o=p["out"][0].astype(bf16), b_o=p["out"][1],
        w_heads=jnp.concatenate([p["iou"], p["reg"]], axis=1).astype(bf16),  # [32,9]
    )


# --------------------------------------------------------------------------- #
# Forward: JAX glue (geometry / sparse quantization) + three pipelined kernels
# --------------------------------------------------------------------------- #
def detection_s2_forward(coords_xyz, features, point_box_idx, boxes, params, max_voxels):
    """coords_xyz:[N,3] valid in-box points, features:[N,64] backbone feats,
    point_box_idx:[N] int box assignment, boxes:[B,8]=[batch,x,y,z,w,l,h,r]."""
    N = coords_xyz.shape[0]
    B = boxes.shape[0]
    Npad = ((N + NT - 1) // NT) * NT
    Vpad = ((max_voxels + VT - 1) // VT) * VT
    num_nt, num_vt = Npad // NT, Vpad // VT

    kp = prepare_kernel_params(params)

    # ---- geometry glue: points into enlarged-box frame ----
    boxes_enl = boxes.at[:, 4:7].multiply(1.5)
    # TODO(synk): points_in_boxes_gpu is a custom CUDA op and the boolean-mask
    # compactions (target_semantic>=0 / in_box_mask) have data-dependent shapes;
    # the point->box assignment of already-valid points is supplied by the caller.
    mapped = boxes_enl[point_box_idx]                                        # [N,8]
    xyz = coords_xyz - mapped[:, 1:4]
    ang = -mapped[:, 7]
    ca, sa = jnp.cos(ang), jnp.sin(ang)
    new_xyz = jnp.stack([xyz[:, 0] * ca - xyz[:, 1] * sa,
                         xyz[:, 0] * sa + xyz[:, 1] * ca,
                         xyz[:, 2]], axis=-1)
    tfield = new_xyz / mapped[:, 4:7] * (6 - 1e-4) + 3.0
    g = jnp.clip(jnp.floor(tfield).astype(jnp.int32), 0, GRID - 1)

    # ---- ME.TensorField UNWEIGHTED_AVERAGE quantization: unique (box, gx, gy, gz) ----
    key4 = (point_box_idx.astype(jnp.int32) * GRID**3
            + g[:, 0] * GRID**2 + g[:, 1] * GRID + g[:, 2])
    uniq, inv = jnp.unique(key4, size=Vpad, fill_value=-1, return_inverse=True)
    vox_valid = (uniq >= 0).astype(f32)[:, None]                             # [Vpad,1]
    uq = jnp.maximum(uniq, 0)
    vbox = uq // GRID**3
    gx, gy, gz = (uq // GRID**2) % GRID, (uq // GRID) % GRID, uq % GRID
    grid_pos = params["grid_emb"][gx, gy, gz] * vox_valid                    # [Vpad,64]

    pt2vox = (inv[None, :] == jnp.arange(Vpad)[:, None]).astype(f32)         # [Vpad,N]
    counts = jnp.maximum(pt2vox.sum(axis=1, keepdims=True), 1.0)
    centroid = (pt2vox @ new_xyz) / counts                                   # downsample_points
    norm_coords = new_xyz - centroid[inv]                                    # normalize_points
    vox2box = ((vbox[None, :] == jnp.arange(B)[:, None]).astype(f32)
               * vox_valid.T)                                                # [B,Vpad]

    # ---- pad points to the tile grid; bf16 storage for the big arrays ----
    nc_pad = jnp.zeros((Npad, 3), f32).at[:N].set(norm_coords)
    ft_pad = jnp.zeros((Npad, C_FEAT), bf16).at[:N].set(features.astype(bf16))
    pt2vox_b = jnp.zeros((Vpad, Npad), bf16).at[:, :N].set(pt2vox.astype(bf16))
    vox2box_b = vox2box.astype(bf16)
    anchors = boxes[:, 1:]                         # box_src sizes already /1.5

    cp = lambda sem: pltpu.CompilerParams(dimension_semantics=sem,
                                          vmem_limit_bytes=VMEM_LIMIT)
    wspec = lambda shape: pl.BlockSpec(shape, lambda *_: (0, 0))

    # ---- kernel A: per-point MLPs (pos_emb_layer / proj / fc_layer) ----
    pt_emb = pl.pallas_call(
        point_mlp_kernel,
        grid=(num_nt,),
        in_specs=[
            pl.BlockSpec((NT, 3), lambda i: (i, 0)),
            pl.BlockSpec((NT, C_FEAT), lambda i: (i, 0)),
            wspec((3, 32)), wspec((1, 32)),
            wspec((C_FEAT, 64)), wspec((32, 64)), wspec((1, 64)),
            wspec((64, 64)), wspec((1, 64)),
            wspec((64, 64)), wspec((1, 64)),
        ],
        out_specs=pl.BlockSpec((NT, 64), lambda i: (i, 0)),
        out_shape=jax.ShapeDtypeStruct((Npad, 64), bf16),
        compiler_params=cp(("parallel",)),
    )(nc_pad, ft_pad, kp["w_pe1"], kp["b_pe1"], kp["w_prp"], kp["w_pe2p"],
      kp["b_cat"], kp["w_f1"], kp["b_f1"], kp["w_f2"], kp["b_f2"])

    # ---- kernel B: tiled segment-max -> voxels, +grid_emb, attention weighting ----
    weighted = pl.pallas_call(
        segmax_attn_kernel,
        grid=(num_vt, num_nt),
        in_specs=[
            pl.BlockSpec((VT, NT), lambda v, n: (v, n)),       # pt2vox (bf16 one-hot)
            pl.BlockSpec((NT, 64), lambda v, n: (n, 0)),       # pt_emb (bf16)
            pl.BlockSpec((VT, 64), lambda v, n: (v, 0)),       # grid_pos
            wspec((64, 32)), wspec((1, 32)), wspec((32, 1)), wspec((1, 1)),
        ],
        out_specs=pl.BlockSpec((VT, 64), lambda v, n: (v, 0)),
        out_shape=jax.ShapeDtypeStruct((Vpad, 64), bf16),
        scratch_shapes=[pltpu.VMEM((VT, 64), f32)],            # running-max accumulator
        compiler_params=cp(("parallel", "arbitrary")),
    )(pt2vox_b, pt_emb, grid_pos, kp["w_a1"], kp["b_a1"], kp["w_a2"], kp["b_a2"])

    # ---- kernel C: scatter_add -> boxes, fc_out, packed heads, dec_box ----
    # TODO(synk): for very large B*V replace the dense one-hot vox2box matmul with
    # scalar-prefetched voxel->box indices (PrefetchScalarGridSpec) accumulation.
    out = pl.pallas_call(
        scatter_heads_kernel,
        grid=(num_vt,),
        in_specs=[
            pl.BlockSpec((B, VT), lambda v: (0, v)),           # vox2box (bf16 one-hot)
            pl.BlockSpec((VT, 64), lambda v: (v, 0)),          # weighted voxel feats
            pl.BlockSpec((B, 7), lambda v: (0, 0)),            # anchors (rois)
            wspec((64, 32)), wspec((1, 32)), wspec((32, 9)),
        ],
        out_specs=pl.BlockSpec((B, 32), lambda v: (0, 0)),
        out_shape=jax.ShapeDtypeStruct((B, 32), f32),
        scratch_shapes=[pltpu.VMEM((B, 64), f32)],
        compiler_params=cp(("arbitrary",)),
    )(vox2box_b, weighted, anchors, kp["w_o"], kp["b_o"], kp["w_heads"])

    iou = out[:, 0:1]
    regs = out[:, 1:9]
    dec = out[:, 9:17]
    rg = jnp.arctan2(dec[:, 7:8], dec[:, 6:7])      # finish dec_box (no Mosaic atan2)
    box_s2 = jnp.concatenate([boxes[:, :1], dec[:, :6], rg], axis=-1)        # [B,8]

    ref_args = (nc_pad, ft_pad, pt2vox_b, grid_pos, vox2box_b, anchors, kp)
    return {"rois": boxes, "iou": iou, "reg": regs, "box": box_s2,
            "dec": dec, "packed": out, "ref_args": ref_args}


# --------------------------------------------------------------------------- #
# Pure-JAX reference of the kernel math (same helpers, full arrays)
# --------------------------------------------------------------------------- #
def _reference(nc, feats, pt2vox, grid_pos, vox2box, anchors, kp):
    pt_emb = _point_mlp_math(nc, feats, kp["w_pe1"], kp["b_pe1"], kp["w_prp"],
                             kp["w_pe2p"], kp["b_cat"], kp["w_f1"], kp["b_f1"],
                             kp["w_f2"], kp["b_f2"])
    down = jnp.max(pt2vox.astype(f32)[:, :, None] * pt_emb.astype(f32)[None, :, :],
                   axis=1)                                                   # [V,64]
    voxel_embs = down + grid_pos
    weighted = _attn_math(voxel_embs, kp["w_a1"], kp["b_a1"], kp["w_a2"], kp["b_a2"])
    box_feat = jnp.dot(vox2box, weighted, preferred_element_type=f32)
    return _heads_math(box_feat, anchors, kp["w_o"], kp["b_o"], kp["w_heads"])


if __name__ == "__main__":
    root = jax.random.PRNGKey(0)
    kparam, kb1, kb2, kb3, kpt, kf = jax.random.split(root, 6)
    params = init_params(kparam)

    N, B = 300, 4              # valid in-box points, fused boxes
    max_voxels = 300           # -> Vpad = 384: exercises a 3x2 kernel-B grid

    batch_idx = jnp.array([0.0, 0.0, 1.0, 1.0])[:, None]
    centers = jax.random.uniform(kb1, (B, 3), minval=-10.0, maxval=10.0)
    sizes = jax.random.uniform(kb2, (B, 3), minval=1.5, maxval=4.0)
    yaws = jax.random.uniform(kb3, (B, 1), minval=-np.pi, maxval=np.pi)
    boxes = jnp.concatenate([batch_idx, centers, sizes, yaws], axis=1)       # [B,8]

    # synthetic points: each point assigned to a box and placed inside it
    point_box_idx = jnp.arange(N, dtype=jnp.int32) % B
    local = jax.random.uniform(kpt, (N, 3), minval=-0.45, maxval=0.45) * (
        sizes[point_box_idx] * 1.5)
    yaw_p = yaws[point_box_idx, 0]
    cx = local[:, 0] * jnp.cos(yaw_p) - local[:, 1] * jnp.sin(yaw_p)
    cy = local[:, 0] * jnp.sin(yaw_p) + local[:, 1] * jnp.cos(yaw_p)
    coords_xyz = jnp.stack([cx, cy, local[:, 2]], axis=-1) + centers[point_box_idx]
    features = 0.1 * jax.random.normal(kf, (N, C_FEAT), f32)                 # backbone['p0']

    res = detection_s2_forward(coords_xyz, features, point_box_idx, boxes,
                               params, max_voxels=max_voxels)
    packed = jax.block_until_ready(res["packed"])

    ref = _reference(*res["ref_args"])
    np.testing.assert_allclose(np.asarray(packed), np.asarray(ref),
                               rtol=2e-2, atol=2e-2)
    box_s2 = res["box"]
    assert box_s2.shape == (B, 8) and bool(jnp.all(jnp.isfinite(box_s2)))
    assert res["iou"].shape == (B, 1) and res["reg"].shape == (B, 8)
    print("KERNEL_OK")
</pallas_src>

<mosaic_0001>
module attributes {stable_mosaic.version = 11 : i64} {
  func.func @point_mlp_kernel(%arg0: i32, %arg1: memref<256x3xf32, #tpu.memory_space<vmem>>, %arg2: memref<256x64xbf16, #tpu.memory_space<vmem>>, %arg3: memref<3x32xf32, #tpu.memory_space<vmem>>, %arg4: memref<1x32xf32, #tpu.memory_space<vmem>>, %arg5: memref<64x64xbf16, #tpu.memory_space<vmem>>, %arg6: memref<32x64xbf16, #tpu.memory_space<vmem>>, %arg7: memref<1x64xf32, #tpu.memory_space<vmem>>, %arg8: memref<64x64xbf16, #tpu.memory_space<vmem>>, %arg9: memref<1x64xf32, #tpu.memory_space<vmem>>, %arg10: memref<64x64xbf16, #tpu.memory_space<vmem>>, %arg11: memref<1x64xf32, #tpu.memory_space<vmem>>, %arg12: memref<256x64xbf16, #tpu.memory_space<vmem>>) attributes {dimension_semantics = [#tpu.dimension_semantics<parallel>], iteration_bounds = array<i64: 2>, scalar_prefetch = 0 : i64, scratch_operands = 0 : i64, tpu.core_type = #tpu.core_type<tc>, window_params = [{transform_indices = @transform_0, window_bounds = array<i64: 256, 3>}, {transform_indices = @transform_1, window_bounds = array<i64: 256, 64>}, {pipeline_mode = #tpu.pipeline_mode<synchronous>, transform_indices = @transform_2, window_bounds = array<i64: 3, 32>}, {pipeline_mode = #tpu.pipeline_mode<synchronous>, transform_indices = @transform_3, window_bounds = array<i64: 1, 32>}, {pipeline_mode = #tpu.pipeline_mode<synchronous>, transform_indices = @transform_4, window_bounds = array<i64: 64, 64>}, {pipeline_mode = #tpu.pipeline_mode<synchronous>, transform_indices = @transform_5, window_bounds = array<i64: 32, 64>}, {pipeline_mode = #tpu.pipeline_mode<synchronous>, transform_indices = @transform_6, window_bounds = array<i64: 1, 64>}, {pipeline_mode = #tpu.pipeline_mode<synchronous>, transform_indices = @transform_7, window_bounds = array<i64: 64, 64>}, {pipeline_mode = #tpu.pipeline_mode<synchronous>, transform_indices = @transform_8, window_bounds = array<i64: 1, 64>}, {pipeline_mode = #tpu.pipeline_mode<synchronous>, transform_indices = @transform_9, window_bounds = array<i64: 64, 64>}, {pipeline_mode = #tpu.pipeline_mode<synchronous>, transform_indices = @transform_10, window_bounds = array<i64: 1, 64>}, {transform_indices = @transform_11, window_bounds = array<i64: 256, 64>}]} {
    %c0 = arith.constant 0 : index
    %c0_0 = arith.constant 0 : index
    %0 = vector.load %arg1[%c0, %c0_0] : memref<256x3xf32, #tpu.memory_space<vmem>>, vector<256x3xf32>
    %c0_1 = arith.constant 0 : index
    %c0_2 = arith.constant 0 : index
    %1 = vector.load %arg2[%c0_1, %c0_2] : memref<256x64xbf16, #tpu.memory_space<vmem>>, vector<256x64xbf16>
    %c0_3 = arith.constant 0 : index
    %c0_4 = arith.constant 0 : index
    %2 = vector.load %arg3[%c0_3, %c0_4] : memref<3x32xf32, #tpu.memory_space<vmem>>, vector<3x32xf32>
    %c0_5 = arith.constant 0 : index
    %c0_6 = arith.constant 0 : index
    %3 = vector.load %arg4[%c0_5, %c0_6] : memref<1x32xf32, #tpu.memory_space<vmem>>, vector<1x32xf32>
    %c0_7 = arith.constant 0 : index
    %c0_8 = arith.constant 0 : index
    %4 = vector.load %arg5[%c0_7, %c0_8] : memref<64x64xbf16, #tpu.memory_space<vmem>>, vector<64x64xbf16>
    %c0_9 = arith.constant 0 : index
    %c0_10 = arith.constant 0 : index
    %5 = vector.load %arg6[%c0_9, %c0_10] : memref<32x64xbf16, #tpu.memory_space<vmem>>, vector<32x64xbf16>
    %c0_11 = arith.constant 0 : index
    %c0_12 = arith.constant 0 : index
    %6 = vector.load %arg7[%c0_11, %c0_12] : memref<1x64xf32, #tpu.memory_space<vmem>>, vector<1x64xf32>
    %c0_13 = arith.constant 0 : index
    %c0_14 = arith.constant 0 : index
    %7 = vector.load %arg8[%c0_13, %c0_14] : memref<64x64xbf16, #tpu.memory_space<vmem>>, vector<64x64xbf16>
    %c0_15 = arith.constant 0 : index
    %c0_16 = arith.constant 0 : index
    %8 = vector.load %arg9[%c0_15, %c0_16] : memref<1x64xf32, #tpu.memory_space<vmem>>, vector<1x64xf32>
    %c0_17 = arith.constant 0 : index
    %c0_18 = arith.constant 0 : index
    %9 = vector.load %arg10[%c0_17, %c0_18] : memref<64x64xbf16, #tpu.memory_space<vmem>>, vector<64x64xbf16>
    %c0_19 = arith.constant 0 : index
    %c0_20 = arith.constant 0 : index
    %10 = vector.load %arg11[%c0_19, %c0_20] : memref<1x64xf32, #tpu.memory_space<vmem>>, vector<1x64xf32>
    %cst = arith.constant dense<0.000000e+00> : vector<256x32xf32>
    %11 = tpu.matmul %0, %2, %cst {dimension_numbers = #tpu.dot_dimension_numbers<[1], [0], [0], [1], [0, 0, 1, 1], [], []>} : vector<256x3xf32>, vector<3x32xf32>, vector<256x32xf32> -> vector<256x32xf32>
    %12 = vector.broadcast %3 : vector<1x32xf32> to vector<256x32xf32>
    %13 = arith.addf %11, %12 : vector<256x32xf32>
    %cst_21 = arith.constant 0.000000e+00 : f32
    %14 = vector.broadcast %cst_21 : f32 to vector<256x32xf32>
    %15 = arith.maximumf %13, %14 : vector<256x32xf32>
    %cst_22 = arith.constant dense<0.000000e+00> : vector<256x64xf32>
    %16 = tpu.matmul %1, %4, %cst_22 {dimension_numbers = #tpu.dot_dimension_numbers<[1], [0], [0], [1], [0, 0, 1, 1], [], []>} : vector<256x64xbf16>, vector<64x64xbf16>, vector<256x64xf32> -> vector<256x64xf32>
    %17 = arith.truncf %15 : vector<256x32xf32> to vector<256x32xbf16>
    %cst_23 = arith.constant dense<0.000000e+00> : vector<256x64xf32>
    %18 = tpu.matmul %17, %5, %cst_23 {dimension_numbers = #tpu.dot_dimension_numbers<[1], [0], [0], [1], [0, 0, 1, 1], [], []>} : vector<256x32xbf16>, vector<32x64xbf16>, vector<256x64xf32> -> vector<256x64xf32>
    %19 = arith.addf %16, %18 : vector<256x64xf32>
    %20 = vector.broadcast %6 : vector<1x64xf32> to vector<256x64xf32>
    %21 = arith.addf %19, %20 : vector<256x64xf32>
    %cst_24 = arith.constant 0.000000e+00 : f32
    %22 = vector.broadcast %cst_24 : f32 to vector<256x64xf32>
    %23 = arith.maximumf %21, %22 : vector<256x64xf32>
    %24 = arith.truncf %23 : vector<256x64xf32> to vector<256x64xbf16>
    %cst_25 = arith.constant dense<0.000000e+00> : vector<256x64xf32>
    %25 = tpu.matmul %24, %7, %cst_25 {dimension_numbers = #tpu.dot_dimension_numbers<[1], [0], [0], [1], [0, 0, 1, 1], [], []>} : vector<256x64xbf16>, vector<64x64xbf16>, vector<256x64xf32> -> vector<256x64xf32>
    %26 = vector.broadcast %8 : vector<1x64xf32> to vector<256x64xf32>
    %27 = arith.addf %25, %26 : vector<256x64xf32>
    %cst_26 = arith.constant 0.000000e+00 : f32
    %28 = vector.broadcast %cst_26 : f32 to vector<256x64xf32>
    %29 = arith.maximumf %27, %28 : vector<256x64xf32>
    %30 = arith.truncf %29 : vector<256x64xf32> to vector<256x64xbf16>
    %cst_27 = arith.constant dense<0.000000e+00> : vector<256x64xf32>
    %31 = tpu.matmul %30, %9, %cst_27 {dimension_numbers = #tpu.dot_dimension_numbers<[1], [0], [0], [1], [0, 0, 1, 1], [], []>} : vector<256x64xbf16>, vector<64x64xbf16>, vector<256x64xf32> -> vector<256x64xf32>
    %32 = vector.broadcast %10 : vector<1x64xf32> to vector<256x64xf32>
    %33 = arith.addf %31, %32 : vector<256x64xf32>
    %cst_28 = arith.constant 0.000000e+00 : f32
    %34 = vector.broadcast %cst_28 : f32 to vector<256x64xf32>
    %35 = arith.maximumf %33, %34 : vector<256x64xf32>
    %36 = arith.truncf %35 : vector<256x64xf32> to vector<256x64xbf16>
    %c0_29 = arith.constant 0 : index
    %c0_30 = arith.constant 0 : index
    %37 = vector.load %arg12[%c0_29, %c0_30] : memref<256x64xbf16, #tpu.memory_space<vmem>>, vector<256x64xbf16>
    tpu.vector_store %arg12[%c0_29, %c0_30], %36 {strides = array<i32>} : memref<256x64xbf16, #tpu.memory_space<vmem>>, vector<256x64xbf16>,
    return
  }
  func.func @transform_0(%arg0: i32) -> (i32, i32) {
    %c0_i32 = arith.constant 0 : i32
    %c0_i32_0 = arith.constant 0 : i32
    return %arg0, %c0_i32 : i32, i32
  }
  func.func @transform_1(%arg0: i32) -> (i32, i32) {
    %c0_i32 = arith.constant 0 : i32
    %c0_i32_0 = arith.constant 0 : i32
    return %arg0, %c0_i32 : i32, i32
  }
  func.func @transform_2(%arg0: i32) -> (i32, i32) {
    %c0_i32 = arith.constant 0 : i32
    %c0_i32_0 = arith.constant 0 : i32
    %c0_i32_1 = arith.constant 0 : i32
    return %c0_i32, %c0_i32_0 : i32, i32
  }
  func.func @transform_3(%arg0: i32) -> (i32, i32) {
    %c0_i32 = arith.constant 0 : i32
    %c0_i32_0 = arith.constant 0 : i32
    %c0_i32_1 = arith.constant 0 : i32
    return %c0_i32, %c0_i32_0 : i32, i32
  }
  func.func @transform_4(%arg0: i32) -> (i32, i32) {
    %c0_i32 = arith.constant 0 : i32
    %c0_i32_0 = arith.constant 0 : i32
    %c0_i32_1 = arith.constant 0 : i32
    return %c0_i32, %c0_i32_0 : i32, i32
  }
  func.func @transform_5(%arg0: i32) -> (i32, i32) {
    %c0_i32 = arith.constant 0 : i32
    %c0_i32_0 = arith.constant 0 : i32
    %c0_i32_1 = arith.constant 0 : i32
    return %c0_i32, %c0_i32_0 : i32, i32
  }
  func.func @transform_6(%arg0: i32) -> (i32, i32) {
    %c0_i32 = arith.constant 0 : i32
    %c0_i32_0 = arith.constant 0 : i32
    %c0_i32_1 = arith.constant 0 : i32
    return %c0_i32, %c0_i32_0 : i32, i32
  }
  func.func @transform_7(%arg0: i32) -> (i32, i32) {
    %c0_i32 = arith.constant 0 : i32
    %c0_i32_0 = arith.constant 0 : i32
    %c0_i32_1 = arith.constant 0 : i32
    return %c0_i32, %c0_i32_0 : i32, i32
  }
  func.func @transform_8(%arg0: i32) -> (i32, i32) {
    %c0_i32 = arith.constant 0 : i32
    %c0_i32_0 = arith.constant 0 : i32
    %c0_i32_1 = arith.constant 0 : i32
    return %c0_i32, %c0_i32_0 : i32, i32
  }
  func.func @transform_9(%arg0: i32) -> (i32, i32) {
    %c0_i32 = arith.constant 0 : i32
    %c0_i32_0 = arith.constant 0 : i32
    %c0_i32_1 = arith.constant 0 : i32
    return %c0_i32, %c0_i32_0 : i32, i32
  }
  func.func @transform_10(%arg0: i32) -> (i32, i32) {
    %c0_i32 = arith.constant 0 : i32
    %c0_i32_0 = arith.constant 0 : i32
    %c0_i32_1 = arith.constant 0 : i32
    return %c0_i32, %c0_i32_0 : i32, i32
  }
  func.func @transform_11(%arg0: i32) -> (i32, i32) {
    %c0_i32 = arith.constant 0 : i32
    %c0_i32_0 = arith.constant 0 : i32
    return %arg0, %c0_i32 : i32, i32
  }
}

</mosaic_0001>

<llo_original>
// kernel: tpu_custom_call.1
$region0: #{tpu_custom_call.1}
  #allocation0 [shape = 'u32[]', space=smem, size = 0x4, offset = 0x4, fixed_abs, tag = 'smem constant byte address 0x4 - core index']
  #allocation1 [shape = 'u32[144,128]{1,0:T(1,128)}', space=vmem, size = 0x12000, scoped, tag = 'internal scratch']
  %s0 = inlined_call_operand.vmem [shape: f32[512,3], index: 0, kind: input, shape index: {}]
  %s1 = inlined_call_operand.vmem [shape: bf16[512,64], index: 1, kind: input, shape index: {}]
  %s2 = inlined_call_operand.vmem [shape: f32[3,32], index: 2, kind: input, shape index: {}]
  %s3 = inlined_call_operand.vmem [shape: f32[1,32], index: 3, kind: input, shape index: {}]
  %s4 = inlined_call_operand.vmem [shape: bf16[64,64], index: 4, kind: input, shape index: {}]
  %s5 = inlined_call_operand.vmem [shape: bf16[32,64], index: 5, kind: input, shape index: {}]
  %s6 = inlined_call_operand.vmem [shape: f32[1,64], index: 6, kind: input, shape index: {}]
  %s7 = inlined_call_operand.vmem [shape: bf16[64,64], index: 7, kind: input, shape index: {}]
  %s8 = inlined_call_operand.vmem [shape: f32[1,64], index: 8, kind: input, shape index: {}]
  %s9 = inlined_call_operand.vmem [shape: bf16[64,64], index: 9, kind: input, shape index: {}]
  %s10 = inlined_call_operand.vmem [shape: f32[1,64], index: 10, kind: input, shape index: {}]
  %s11 = inlined_call_operand.vmem [shape: bf16[512,64], index: 11, kind: output, shape index: {}]
  %s12 = sld [smem:[#allocation0]]
  $region77: #{tpu_custom_call.1} parent=0
    _
  %s14 = ssub.s32 1, %s12
  %s15 = scalar_select 0, %s14, %s12
  loop: start=0, step=1, limit=4
  $region2: #{tpu_custom_call.1} parent=0 // loop_pre_header
    _
  $region3: #{tpu_custom_call.1} parent=0 // loop_header
    %s17 = sphi 0, %s21
    %p18 = scmp.ge.s32.totalorder %s17, 4
    %s27 = sphi 0, %s29
    %s30 = sphi 0, %s27
    %s31 = sphi 0, %s30
    %s47 = sphi 0, %s31
    %s53 = sphi 0, %s55
    %s56 = sphi 0, %s53
    %s57 = sphi 0, %s56
    %s73 = sphi 0, %s57
    %s77 = sphi 0, %s77
    %s79 = sphi 0, %s77
    %s80 = sphi 0, %s79
    %s94 = sphi 0, %s80
    %s98 = sphi 0, %s98
    %s100 = sphi 0, %s98
    %s101 = sphi 0, %s100
    %s115 = sphi 0, %s101
    %s119 = sphi 0, %s119
    %s121 = sphi 0, %s119
    %s122 = sphi 0, %s121
    %s136 = sphi 0, %s122
    %s140 = sphi 0, %s140
    %s142 = sphi 0, %s140
    %s143 = sphi 0, %s142
    %s157 = sphi 0, %s143
    %s161 = sphi 0, %s161
    %s163 = sphi 0, %s161
    %s164 = sphi 0, %s163
    %s178 = sphi 0, %s164
    %s182 = sphi 0, %s182
    %s184 = sphi 0, %s182
    %s185 = sphi 0, %s184
    %s199 = sphi 0, %s185
    %s203 = sphi 0, %s203
    %s205 = sphi 0, %s203
    %s206 = sphi 0, %s205
    %s220 = sphi 0, %s206
    %s224 = sphi 0, %s224
    %s226 = sphi 0, %s224
    %s227 = sphi 0, %s226
    %s241 = sphi 0, %s227
    %s245 = sphi 0, %s245
    %s247 = sphi 0, %s245
    %s248 = sphi 0, %s247
    %s262 = sphi 0, %s248
    %s268 = sphi 0, %s270
    %s271 = sphi 0, %s268
    %s272 = sphi 0, %s271
    %s288 = sphi 0, %s272
  $region4: #{tpu_custom_call.1} parent=0 // loop_header_branch
    %20 = sbr.rel (%p18) target = $region8
  $region5: #{tpu_custom_call.1} parent=0 // loop_body
    %s22 = ssub.s32 %s17, 1
    %s23 = ssub.s32 %s17, 2
    %s24 = sadd.s32 %s17, 1
    %s25 = ssub.s32 %s17, %s24
    %p26 = scmp.eq.s32.totalorder %s25, 0
    %s28 = sadd.s32 %s27, 1
    %s29 = scalar_select %p26, %s27, %s28
    %p32 = pneg %p26
    %p33 = scmp.eq.s32.totalorder %s17, 1
    %p34 = por %p32, %p33
    %p35 = scmp.ne.s32.totalorder %s27, %s30
    %p36 = scmp.eq.s32.totalorder %s17, 0
    %p37 = por %p35, %p36
    %p38 = scmp.ne.s32.totalorder %s27, %s30
    %p39 = scmp.eq.s32.totalorder %s22, 1
    %p40 = por %p38, %p39
    %p41 = scmp.ne.s32.totalorder %s30, %s31
    %p42 = scmp.eq.s32.totalorder %s22, 0
    %p43 = por %p41, %p42
    %p44 = scmp.ne.s32.totalorder %s30, %s31
    %p45 = scmp.eq.s32.totalorder %s23, 1
    %p46 = por %p44, %p45
    %p48 = scmp.ne.s32.totalorder %s31, %s47
    %p49 = scmp.eq.s32.totalorder %s23, 0
    %p50 = por %p48, %p49
    %s51 = ssub.s32 %s17, %s24
    %p52 = scmp.eq.s32.totalorder %s51, 0
    %s54 = sadd.s32 %s53, 1
    %s55 = scalar_select %p52, %s53, %s54
    %p58 = pneg %p52
    %p59 = scmp.eq.s32.totalorder %s17, 1
    %p60 = por %p58, %p59
    %p61 = scmp.ne.s32.totalorder %s53, %s56
    %p62 = scmp.eq.s32.totalorder %s17, 0
    %p63 = por %p61, %p62
    %p64 = scmp.ne.s32.totalorder %s53, %s56
    %p65 = scmp.eq.s32.totalorder %s22, 1
    %p66 = por %p64, %p65
    %p67 = scmp.ne.s32.totalorder %s56, %s57
    %p68 = scmp.eq.s32.totalorder %s22, 0
    %p69 = por %p67, %p68
    %p70 = scmp.ne.s32.totalorder %s56, %s57
    %p71 = scmp.eq.s32.totalorder %s23, 1
    %p72 = por %p70, %p71
    %p74 = scmp.ne.s32.totalorder %s57, %s73
    %p75 = scmp.eq.s32.totalorder %s23, 0
    %p76 = por %p74, %p75
    %s78 = sadd.s32 %s77, 1
    %p81 = scmp.eq.s32.totalorder %s17, 1
    %p82 = scmp.ne.s32.totalorder %s77, %s79
    %p83 = scmp.eq.s32.totalorder %s17, 0
    %p84 = por %p82, %p83
    %p85 = scmp.ne.s32.totalorder %s77, %s79
    %p86 = scmp.eq.s32.totalorder %s22, 1
    %p87 = por %p85, %p86
    %p88 = scmp.ne.s32.totalorder %s79, %s80
    %p89 = scmp.eq.s32.totalorder %s22, 0
    %p90 = por %p88, %p89
    %p91 = scmp.ne.s32.totalorder %s79, %s80
    %p92 = scmp.eq.s32.totalorder %s23, 1
    %p93 = por %p91, %p92
    %p95 = scmp.ne.s32.totalorder %s80, %s94
    %p96 = scmp.eq.s32.totalorder %s23, 0
    %p97 = por %p95, %p96
    %s99 = sadd.s32 %s98, 1
    %p102 = scmp.eq.s32.totalorder %s17, 1
    %p103 = scmp.ne.s32.totalorder %s98, %s100
    %p104 = scmp.eq.s32.totalorder %s17, 0
    %p105 = por %p103, %p104
    %p106 = scmp.ne.s32.totalorder %s98, %s100
    %p107 = scmp.eq.s32.totalorder %s22, 1
    %p108 = por %p106, %p107
    %p109 = scmp.ne.s32.totalorder %s100, %s101
    %p110 = scmp.eq.s32.totalorder %s22, 0
    %p111 = por %p109, %p110
    %p112 = scmp.ne.s32.totalorder %s100, %s101
    %p113 = scmp.eq.s32.totalorder %s23, 1
    %p114 = por %p112, %p113
    %p116 = scmp.ne.s32.totalorder %s101, %s115
    %p117 = scmp.eq.s32.totalorder %s23, 0
    %p118 = por %p116, %p117
    %s120 = sadd.s32 %s119, 1
    %p123 = scmp.eq.s32.totalorder %s17, 1
    %p124 = scmp.ne.s32.totalorder %s119, %s121
    %p125 = scmp.eq.s32.totalorder %s17, 0
    %p126 = por %p124, %p125
    %p127 = scmp.ne.s32.totalorder %s119, %s121
    %p128 = scmp.eq.s32.totalorder %s22, 1
    %p129 = por %p127, %p128
    %p130 = scmp.ne.s32.totalorder %s121, %s122
    %p131 = scmp.eq.s32.totalorder %s22, 0
    %p132 = por %p130, %p131
    %p133 = scmp.ne.s32.totalorder %s121, %s122
    %p134 = scmp.eq.s32.totalorder %s23, 1
    %p135 = por %p133, %p134
    %p137 = scmp.ne.s32.totalorder %s122, %s136
    %p138 = scmp.eq.s32.totalorder %s23, 0
    %p139 = por %p137, %p138
    %s141 = sadd.s32 %s140, 1
    %p144 = scmp.eq.s32.totalorder %s17, 1
    %p145 = scmp.ne.s32.totalorder %s140, %s142
    %p146 = scmp.eq.s32.totalorder %s17, 0
    %p147 = por %p145, %p146
    %p148 = scmp.ne.s32.totalorder %s140, %s142
    %p149 = scmp.eq.s32.totalorder %s22, 1
    %p150 = por %p148, %p149
    %p151 = scmp.ne.s32.totalorder %s142, %s143
    %p152 = scmp.eq.s32.totalorder %s22, 0
    %p153 = por %p151, %p152
    %p154 = scmp.ne.s32.totalorder %s142, %s143
    %p155 = scmp.eq.s32.totalorder %s23, 1
    %p156 = por %p154, %p155
    %p158 = scmp.ne.s32.totalorder %s143, %s157
    %p159 = scmp.eq.s32.totalorder %s23, 0
    %p160 = por %p158, %p159
    %s162 = sadd.s32 %s161, 1
    %p165 = scmp.eq.s32.totalorder %s17, 1
    %p166 = scmp.ne.s32.totalorder %s161, %s163
    %p167 = scmp.eq.s32.totalorder %s17, 0
    %p168 = por %p166, %p167
    %p169 = scmp.ne.s32.totalorder %s161, %s163
    %p170 = scmp.eq.s32.totalorder %s22, 1
    %p171 = por %p169, %p170
    %p172 = scmp.ne.s32.totalorder %s163, %s164
    %p173 = scmp.eq.s32.totalorder %s22, 0
    %p174 = por %p172, %p173
    %p175 = scmp.ne.s32.totalorder %s163, %s164
    %p176 = scmp.eq.s32.totalorder %s23, 1
    %p177 = por %p175, %p176
    %p179 = scmp.ne.s32.totalorder %s164, %s178
    %p180 = scmp.eq.s32.totalorder %s23, 0
    %p181 = por %p179, %p180
    %s183 = sadd.s32 %s182, 1
    %p186 = scmp.eq.s32.totalorder %s17, 1
    %p187 = scmp.ne.s32.totalorder %s182, %s184
    %p188 = scmp.eq.s32.totalorder %s17, 0
    %p189 = por %p187, %p188
    %p190 = scmp.ne.s32.totalorder %s182, %s184
    %p191 = scmp.eq.s32.totalorder %s22, 1
    %p192 = por %p190, %p191
    %p193 = scmp.ne.s32.totalorder %s184, %s185
    %p194 = scmp.eq.s32.totalorder %s22, 0
    %p195 = por %p193, %p194
    %p196 = scmp.ne.s32.totalorder %s184, %s185
    %p197 = scmp.eq.s32.totalorder %s23, 1
    %p198 = por %p196, %p197
    %p200 = scmp.ne.s32.totalorder %s185, %s199
    %p201 = scmp.eq.s32.totalorder %s23, 0
    %p202 = por %p200, %p201
    %s204 = sadd.s32 %s203, 1
    %p207 = scmp.eq.s32.totalorder %s17, 1
    %p208 = scmp.ne.s32.totalorder %s203, %s205
    %p209 = scmp.eq.s32.totalorder %s17, 0
    %p210 = por %p208, %p209
    %p211 = scmp.ne.s32.totalorder %s203, %s205
    %p212 = scmp.eq.s32.totalorder %s22, 1
    %p213 = por %p211, %p212
    %p214 = scmp.ne.s32.totalorder %s205, %s206
    %p215 = scmp.eq.s32.totalorder %s22, 0
    %p216 = por %p214, %p215
    %p217 = scmp.ne.s32.totalorder %s205, %s206
    %p218 = scmp.eq.s32.totalorder %s23, 1
    %p219 = por %p217, %p218
    %p221 = scmp.ne.s32.totalorder %s206, %s220
    %p222 = scmp.eq.s32.totalorder %s23, 0
    %p223 = por %p221, %p222
    %s225 = sadd.s32 %s224, 1
    %p228 = scmp.eq.s32.totalorder %s17, 1
    %p229 = scmp.ne.s32.totalorder %s224, %s226
    %p230 = scmp.eq.s32.totalorder %s17, 0
    %p231 = por %p229, %p230
    %p232 = scmp.ne.s32.totalorder %s224, %s226
    %p233 = scmp.eq.s32.totalorder %s22, 1
    %p234 = por %p232, %p233
    %p235 = scmp.ne.s32.totalorder %s226, %s227
    %p236 = scmp.eq.s32.totalorder %s22, 0
    %p237 = por %p235, %p236
    %p238 = scmp.ne.s32.totalorder %s226, %s227
    %p239 = scmp.eq.s32.totalorder %s23, 1
    %p240 = por %p238, %p239
    %p242 = scmp.ne.s32.totalorder %s227, %s241
    %p243 = scmp.eq.s32.totalorder %s23, 0
    %p244 = por %p242, %p243
    %s246 = sadd.s32 %s245, 1
    %p249 = scmp.eq.s32.totalorder %s17, 1
    %p250 = scmp.ne.s32.totalorder %s245, %s247
    %p251 = scmp.eq.s32.totalorder %s17, 0
    %p252 = por %p250, %p251
    %p253 = scmp.ne.s32.totalorder %s245, %s247
    %p254 = scmp.eq.s32.totalorder %s22, 1
    %p255 = por %p253, %p254
    %p256 = scmp.ne.s32.totalorder %s247, %s248
    %p257 = scmp.eq.s32.totalorder %s22, 0
    %p258 = por %p256, %p257
    %p259 = scmp.ne.s32.totalorder %s247, %s248
    %p260 = scmp.eq.s32.totalorder %s23, 1
    %p261 = por %p259, %p260
    %p263 = scmp.ne.s32.totalorder %s248, %s262
    %p264 = scmp.eq.s32.totalorder %s23, 0
    %p265 = por %p263, %p264
    %s266 = ssub.s32 %s17, %s24
    %p267 = scmp.eq.s32.totalorder %s266, 0
    %s269 = sadd.s32 %s268, 1
    %s270 = scalar_select %p267, %s268, %s269
    %p273 = pneg %p267
    %p274 = scmp.eq.s32.totalorder %s17, 1
    %p275 = por %p273, %p274
    %p276 = scmp.ne.s32.totalorder %s268, %s271
    %p277 = scmp.eq.s32.totalorder %s17, 0
    %p278 = por %p276, %p277
    %p279 = scmp.ne.s32.totalorder %s268, %s271
    %p280 = scmp.eq.s32.totalorder %s22, 1
    %p281 = por %p279, %p280
    %p282 = scmp.ne.s32.totalorder %s271, %s272
    %p283 = scmp.eq.s32.totalorder %s22, 0
    %p284 = por %p282, %p283
    %p285 = scmp.ne.s32.totalorder %s271, %s272
    %p286 = scmp.eq.s32.totalorder %s23, 1
    %p287 = por %p285, %p286
    %p289 = scmp.ne.s32.totalorder %s272, %s288
    %p290 = scmp.eq.s32.totalorder %s23, 0
    %p291 = por %p289, %p290
    %p292 = scmp.le.s32.totalorder 1, %s17
    %p293 = scmp.lt.s32.totalorder %s17, 3
    %p294 = pnand %p292, %p293
    %p295 = pneg %p294
    // Predicated region
    $region9: #{tpu_custom_call.1} parent=5 // pred_check
      _
    $region10: #{tpu_custom_call.1} parent=5 // pred_check_branch
      %297 = sbr.rel (%p294) target = $region12
    $region11: #{tpu_custom_call.1} parent=5 // pred_region
      %s298 = ssub.s32 %s17, 1
      // Predicated region
      $region13: #{tpu_custom_call.1} parent=11 // pred_check
        %p299 = pneg %p90
      $region14: #{tpu_custom_call.1} parent=11 // pred_check_branch
        %301 = sbr.rel (%p299) target = $region16
      $region15: #{tpu_custom_call.1} parent=11 // pred_region
        _
      $region16: #{tpu_custom_call.1} parent=11 // pred_fallthru
        _
      // Predicated region
      $region17: #{tpu_custom_call.1} parent=11 // pred_check
        %p302 = pneg %p111
      $region18: #{tpu_custom_call.1} parent=11 // pred_check_branch
        %304 = sbr.rel (%p302) target = $region20
      $region19: #{tpu_custom_call.1} parent=11 // pred_region
        _
      $region20: #{tpu_custom_call.1} parent=11 // pred_fallthru
        _
      // Predicated region
      $region21: #{tpu_custom_call.1} parent=11 // pred_check
        %p305 = pneg %p132
      $region22: #{tpu_custom_call.1} parent=11 // pred_check_branch
        %307 = sbr.rel (%p305) target = $region24
      $region23: #{tpu_custom_call.1} parent=11 // pred_region
        _
      $region24: #{tpu_custom_call.1} parent=11 // pred_fallthru
        _
      // Predicated region
      $region25: #{tpu_custom_call.1} parent=11 // pred_check
        %p308 = pneg %p153
      $region26: #{tpu_custom_call.1} parent=11 // pred_check_branch
        %310 = sbr.rel (%p308) target = $region28
      $region27: #{tpu_custom_call.1} parent=11 // pred_region
        _
      $region28: #{tpu_custom_call.1} parent=11 // pred_fallthru
        _
      // Predicated region
      $region29: #{tpu_custom_call.1} parent=11 // pred_check
        %p311 = pneg %p174
      $region30: #{tpu_custom_call.1} parent=11 // pred_check_branch
        %313 = sbr.rel (%p311) target = $region32
      $region31: #{tpu_custom_call.1} parent=11 // pred_region
        _
      $region32: #{tpu_custom_call.1} parent=11 // pred_fallthru
        _
      // Predicated region
      $region33: #{tpu_custom_call.1} parent=11 // pred_check
        %p314 = pneg %p195
      $region34: #{tpu_custom_call.1} parent=11 // pred_check_branch
        %316 = sbr.rel (%p314) target = $region36
      $region35: #{tpu_custom_call.1} parent=11 // pred_region
        _
      $region36: #{tpu_custom_call.1} parent=11 // pred_fallthru
        _
      // Predicated region
      $region37: #{tpu_custom_call.1} parent=11 // pred_check
        %p317 = pneg %p216
      $region38: #{tpu_custom_call.1} parent=11 // pred_check_branch
        %319 = sbr.rel (%p317) target = $region40
      $region39: #{tpu_custom_call.1} parent=11 // pred_region
        _
      $region40: #{tpu_custom_call.1} parent=11 // pred_fallthru
        _
      // Predicated region
      $region41: #{tpu_custom_call.1} parent=11 // pred_check
        %p320 = pneg %p237
      $region42: #{tpu_custom_call.1} parent=11 // pred_check_branch
        %322 = sbr.rel (%p320) target = $region44
      $region43: #{tpu_custom_call.1} parent=11 // pred_region
        _
      $region44: #{tpu_custom_call.1} parent=11 // pred_fallthru
        _
      // Predicated region
      $region45: #{tpu_custom_call.1} parent=11 // pred_check
        %p323 = pneg %p258
      $region46: #{tpu_custom_call.1} parent=11 // pred_check_branch
        %325 = sbr.rel (%p323) target = $region48
      $region47: #{tpu_custom_call.1} parent=11 // pred_region
        _
      $region48: #{tpu_custom_call.1} parent=11 // pred_fallthru
        _
    $region12: #{tpu_custom_call.1} parent=5 // pred_fallthru
      _
    %p326 = scmp.lt.s32.totalorder %s17, 2
    // Predicated region
    $region49: #{tpu_custom_call.1} parent=5 // pred_check
      %p327 = pneg %p326
    $region50: #{tpu_custom_call.1} parent=5 // pred_check_branch
      %329 = sbr.rel (%p327) target = $region52
    $region51: #{tpu_custom_call.1} parent=5 // pred_region
      // Predicated region
      $region53: #{tpu_custom_call.1} parent=51 // pred_check
        %p330 = pneg %p37
      $region54: #{tpu_custom_call.1} parent=51 // pred_check_branch
        %332 = sbr.rel (%p330) target = $region56
      $region55: #{tpu_custom_call.1} parent=51 // pred_region
        %s333 = smul.u32 32, %s17
        %p334 = scmp.lt.s32.totalorder %s333, 63
        %s335 = scalar_select %p334, %s333, 63
        %s336 = smul.addr %s335, 8
        %s337 = scalar_lea.vmem %s0, %s336
        %s338 = smul.u32 32, %s17
      $region56: #{tpu_custom_call.1} parent=51 // pred_fallthru
        _
      // Predicated region
      $region57: #{tpu_custom_call.1} parent=51 // pred_check
        %p339 = pneg %p63
      $region58: #{tpu_custom_call.1} parent=51 // pred_check_branch
        %341 = sbr.rel (%p339) target = $region60
      $region59: #{tpu_custom_call.1} parent=51 // pred_region
        %s342 = smul.u32 32, %s17
        %p343 = scmp.lt.s32.totalorder %s342, 63
        %s344 = scalar_select %p343, %s342, 63
        %s345 = smul.addr %s344, 4
        %s346 = scalar_lea.vmem %s1, %s345
        %s347 = smul.u32 32, %s17
      $region60: #{tpu_custom_call.1} parent=51 // pred_fallthru
        _
    $region52: #{tpu_custom_call.1} parent=5 // pred_fallthru
      _
    %p348 = scmp.le.s32.totalorder 1, %s17
    %p349 = scmp.lt.s32.totalorder %s17, 3
    %p350 = pnand %p348, %p349
    %p351 = pneg %p350
    // Predicated region
    $region61: #{tpu_custom_call.1} parent=5 // pred_check
      _
    $region62: #{tpu_custom_call.1} parent=5 // pred_check_branch
      %353 = sbr.rel (%p350) target = $region64
    $region63: #{tpu_custom_call.1} parent=5 // pred_region
      %s354 = ssub.s32 %s17, 1
      %s355 = smul.u32 32, %s22
      %p356 = scmp.lt.s32.totalorder %s355, 63
      %s357 = scalar_select %p356, %s355, 63
      %s358 = smul.addr %s357, 8
      %s359 = scalar_lea.vmem %s0, %s358
      %p360 = pneg %p43
      %p361 = pneg %p40
      %s362 = smul.u32 32, %s22
      %p363 = scmp.lt.s32.totalorder %s362, 63
      %s364 = scalar_select %p363, %s362, 63
      %s365 = smul.addr %s364, 4
      %s366 = scalar_lea.vmem %s1, %s365
      %p367 = pneg %p69
      %p368 = pneg %p66
      %p369 = pneg %p90
      %p370 = pneg %p87
      %p371 = pneg %p111
      %p372 = pneg %p108
      %p373 = pneg %p132
      %p374 = pneg %p129
      %p375 = pneg %p153
      %p376 = pneg %p150
      %p377 = pneg %p174
      %p378 = pneg %p171
      %p379 = pneg %p195
      %p380 = pneg %p192
      %p381 = pneg %p216
      %p382 = pneg %p213
      %p383 = pneg %p237
      %p384 = pneg %p234
      %p385 = pneg %p258
      %p386 = pneg %p255
      %p387 = pneg %p284
      %p388 = pneg %p281
      %s389 = smul.u32 32, %s22
      %p390 = scmp.lt.s32.totalorder %s389, 63
      %s391 = scalar_select %p390, %s389, 63
      %s392 = smul.addr %s391, 4
      %s393 = scalar_lea.vmem %s11, %s392
      %s394 = smul.u32 32, %s22
      %p395 = scmp.lt.s32.totalorder %s394, 63
      %s396 = scalar_select %p395, %s394, 63
      %s397 = smul.addr %s396, 8
      %s398 = scalar_lea.vmem %s0, %s397
      %s399 = smul.u32 32, %s22
      %s400 = smul.u32 32, %s22
      %p401 = scmp.lt.s32.totalorder %s400, 63
      %s402 = scalar_select %p401, %s400, 63
      %s403 = smul.addr %s402, 4
      %s404 = scalar_lea.vmem %s1, %s403
      %s405 = smul.u32 32, %s22
      %s406 = smul.u32 32, %s22
      %p407 = scmp.lt.s32.totalorder %s406, 63
      %s408 = scalar_select %p407, %s406, 63
      %s409 = smul.addr %s408, 4
      %s410 = scalar_lea.vmem %s11, %s409
      %s411 = smul.u32 32, %s22
      %v413 = vld [vmem:[%s398] sm:$0xff]
      %v414 = vld [vmem:[%s398 + $0x8] sm:$0xff]
      %v415 = vld [vmem:[%s398 + $0x10] sm:$0xff]
      %v416 = vld [vmem:[%s398 + $0x18] sm:$0xff]
      %v417 = vld [vmem:[%s398 + $0x20] sm:$0xff]
      %v418 = vld [vmem:[%s398 + $0x28] sm:$0xff]
      %v419 = vld [vmem:[%s398 + $0x30] sm:$0xff]
      %v420 = vld [vmem:[%s398 + $0x38] sm:$0xff]
      %v421 = vld [vmem:[%s398 + $0x40] sm:$0xff]
      %v422 = vld [vmem:[%s398 + $0x48] sm:$0xff]
      %v423 = vld [vmem:[%s398 + $0x50] sm:$0xff]
      %v424 = vld [vmem:[%s398 + $0x58] sm:$0xff]
      %v425 = vld [vmem:[%s398 + $0x60] sm:$0xff]
      %v426 = vld [vmem:[%s398 + $0x68] sm:$0xff]
      %v427 = vld [vmem:[%s398 + $0x70] sm:$0xff]
      %v428 = vld [vmem:[%s398 + $0x78] sm:$0xff]
      %v429 = vld [vmem:[%s398 + $0x80] sm:$0xff]
      %v430 = vld [vmem:[%s398 + $0x88] sm:$0xff]
      %v431 = vld [vmem:[%s398 + $0x90] sm:$0xff]
      %v432 = vld [vmem:[%s398 + $0x98] sm:$0xff]
      %v433 = vld [vmem:[%s398 + $0xa0] sm:$0xff]
      %v434 = vld [vmem:[%s398 + $0xa8] sm:$0xff]
      %v435 = vld [vmem:[%s398 + $0xb0] sm:$0xff]
      %v436 = vld [vmem:[%s398 + $0xb8] sm:$0xff]
      %v437 = vld [vmem:[%s398 + $0xc0] sm:$0xff]
      %v438 = vld [vmem:[%s398 + $0xc8] sm:$0xff]
      %v439 = vld [vmem:[%s398 + $0xd0] sm:$0xff]
      %v440 = vld [vmem:[%s398 + $0xd8] sm:$0xff]
      %v441 = vld [vmem:[%s398 + $0xe0] sm:$0xff]
      %v442 = vld [vmem:[%s398 + $0xe8] sm:$0xff]
      %v443 = vld [vmem:[%s398 + $0xf0] sm:$0xff]
      %v444 = vld [vmem:[%s398 + $0xf8] sm:$0xff]
      %v445 = vld [vmem:[%s404] sm:$0xf]
      %v446 = vld [vmem:[%s404 + $0x4] sm:$0xf]
      %v447 = vld [vmem:[%s404 + $0x8] sm:$0xf]
      %v448 = vld [vmem:[%s404 + $0xc] sm:$0xf]
      %v449 = vld [vmem:[%s404 + $0x10] sm:$0xf]
      %v450 = vld [vmem:[%s404 + $0x14] sm:$0xf]
      %v451 = vld [vmem:[%s404 + $0x18] sm:$0xf]
      %v452 = vld [vmem:[%s404 + $0x1c] sm:$0xf]
      %v453 = vld [vmem:[%s404 + $0x20] sm:$0xf]
      %v454 = vld [vmem:[%s404 + $0x24] sm:$0xf]
      %v455 = vld [vmem:[%s404 + $0x28] sm:$0xf]
      %v456 = vld [vmem:[%s404 + $0x2c] sm:$0xf]
      %v457 = vld [vmem:[%s404 + $0x30] sm:$0xf]
      %v458 = vld [vmem:[%s404 + $0x34] sm:$0xf]
      %v459 = vld [vmem:[%s404 + $0x38] sm:$0xf]
      %v460 = vld [vmem:[%s404 + $0x3c] sm:$0xf]
      %v461 = vld [vmem:[%s404 + $0x40] sm:$0xf]
      %v462 = vld [vmem:[%s404 + $0x44] sm:$0xf]
      %v463 = vld [vmem:[%s404 + $0x48] sm:$0xf]
      %v464 = vld [vmem:[%s404 + $0x4c] sm:$0xf]
      %v465 = vld [vmem:[%s404 + $0x50] sm:$0xf]
      %v466 = vld [vmem:[%s404 + $0x54] sm:$0xf]
      %v467 = vld [vmem:[%s404 + $0x58] sm:$0xf]
      %v468 = vld [vmem:[%s404 + $0x5c] sm:$0xf]
      %v469 = vld [vmem:[%s404 + $0x60] sm:$0xf]
      %v470 = vld [vmem:[%s404 + $0x64] sm:$0xf]
      %v471 = vld [vmem:[%s404 + $0x68] sm:$0xf]
      %v472 = vld [vmem:[%s404 + $0x6c] sm:$0xf]
      %v473 = vld [vmem:[%s404 + $0x70] sm:$0xf]
      %v474 = vld [vmem:[%s404 + $0x74] sm:$0xf]
      %v475 = vld [vmem:[%s404 + $0x78] sm:$0xf]
      %v476 = vld [vmem:[%s404 + $0x7c] sm:$0xf]
      %v477 = vld [vmem:[%s2] sm:$0x7]
      %v478 = vld [vmem:[%s3] sm:$0x1]
      %v479 = vld [vmem:[%s4] sm:$0xf]
      %v480 = vld [vmem:[%s4 + $0x4] sm:$0xf]
      %v481 = vld [vmem:[%s4 + $0x8] sm:$0xf]
      %v482 = vld [vmem:[%s4 + $0xc] sm:$0xf]
      %v483 = vld [vmem:[%s4 + $0x10] sm:$0xf]
      %v484 = vld [vmem:[%s4 + $0x14] sm:$0xf]
      %v485 = vld [vmem:[%s4 + $0x18] sm:$0xf]
      %v486 = vld [vmem:[%s4 + $0x1c] sm:$0xf]
      %v487 = vld [vmem:[%s5] sm:$0xf]
      %v488 = vld [vmem:[%s5 + $0x4] sm:$0xf]
      %v489 = vld [vmem:[%s5 + $0x8] sm:$0xf]
      %v490 = vld [vmem:[%s5 + $0xc] sm:$0xf]
      %v491 = vld [vmem:[%s6] sm:$0x1]
      %v492 = vld [vmem:[%s7] sm:$0xf]
      %v493 = vld [vmem:[%s7 + $0x4] sm:$0xf]
      %v494 = vld [vmem:[%s7 + $0x8] sm:$0xf]
      %v495 = vld [vmem:[%s7 + $0xc] sm:$0xf]
      %v496 = vld [vmem:[%s7 + $0x10] sm:$0xf]
      %v497 = vld [vmem:[%s7 + $0x14] sm:$0xf]
      %v498 = vld [vmem:[%s7 + $0x18] sm:$0xf]
      %v499 = vld [vmem:[%s7 + $0x1c] sm:$0xf]
      %v500 = vld [vmem:[%s8] sm:$0x1]
      %v501 = vld [vmem:[%s9] sm:$0xf]
      %v502 = vld [vmem:[%s9 + $0x4] sm:$0xf]
      %v503 = vld [vmem:[%s9 + $0x8] sm:$0xf]
      %v504 = vld [vmem:[%s9 + $0xc] sm:$0xf]
      %v505 = vld [vmem:[%s9 + $0x10] sm:$0xf]
      %v506 = vld [vmem:[%s9 + $0x14] sm:$0xf]
      %v507 = vld [vmem:[%s9 + $0x18] sm:$0xf]
      %v508 = vld [vmem:[%s9 + $0x1c] sm:$0xf]
      %v509 = vld [vmem:[%s10] sm:$0x1]
      %v511 = vlaneseq
      %v512 = vshrl.u32 %v511, 7
      %v513 = vsub.s32 0, %v512
      %v514 = vrot.slane %v478, %v513
      %vm516 = vcmask 23552
      %v518 = vsel %vm516, %v413, 0
      %v521 = vsel %vm516, %v414, 0
      %v524 = vsel %vm516, %v415, 0
      %v527 = vsel %vm516, %v416, 0
      %v530 = vsel %vm516, %v417, 0
      %v533 = vsel %vm516, %v418, 0
      %v536 = vsel %vm516, %v419, 0
      %v539 = vsel %vm516, %v420, 0
      %v542 = vsel %vm516, %v421, 0
      %v545 = vsel %vm516, %v422, 0
      %v548 = vsel %vm516, %v423, 0
      %v551 = vsel %vm516, %v424, 0
      %v554 = vsel %vm516, %v425, 0
      %v557 = vsel %vm516, %v426, 0
      %v560 = vsel %vm516, %v427, 0
      %v563 = vsel %vm516, %v428, 0
      %v566 = vsel %vm516, %v429, 0
      %v569 = vsel %vm516, %v430, 0
      %v572 = vsel %vm516, %v431, 0
      %v575 = vsel %vm516, %v432, 0
      %v578 = vsel %vm516, %v433, 0
      %v581 = vsel %vm516, %v434, 0
      %v584 = vsel %vm516, %v435, 0
      %v587 = vsel %vm516, %v436, 0
      %v590 = vsel %vm516, %v437, 0
      %v593 = vsel %vm516, %v438, 0
      %v596 = vsel %vm516, %v439, 0
      %v599 = vsel %vm516, %v440, 0
      %v602 = vsel %vm516, %v441, 0
      %v605 = vsel %vm516, %v442, 0
      %v608 = vsel %vm516, %v443, 0
      %v611 = vsel %vm516, %v444, 0
      %vm613 = vcmask 1042432
      %v615 = vsel %vm613, %v477, 0
      %617 = vmatprep.subr.mxu0 0.0
      %618 = vmatpush1.msra.mxu0 0.0
      %619 = vmatprep.subr.mxu0 0.0
      %620 = vmatpush1.msra.mxu0 0.0
      %621 = vmatprep.subr.mxu0 0.0
      %622 = vmatpush1.msra.mxu0 0.0
      %623 = vmatprep.subr.mxu0 0.0
      %624 = vmatpush1.msra.mxu0 0.0
      %625 = vmatprep.subr.mxu0 0.0
      %626 = vmatpush1.msra.mxu0 0.0
      %627 = vmatprep.subr.mxu0 0.0
      %628 = vmatpush1.msra.mxu0 0.0
      %629 = vmatprep.subr.mxu0 0.0
      %630 = vmatpush1.msra.mxu0 0.0
      %631 = vmatprep.subr.mxu0 0.0
      %632 = vmatpush1.msra.mxu0 0.0
      %633 = vmatprep.subr.mxu0 0.0
      %634 = vmatpush1.msra.mxu0 0.0
      %635 = vmatprep.subr.mxu0 0.0
      %636 = vmatpush1.msra.mxu0 0.0
      %637 = vmatprep.subr.mxu0 0.0
      %638 = vmatpush1.msra.mxu0 0.0
      %639 = vmatprep.subr.mxu0 0.0
      %640 = vmatpush1.msra.mxu0 0.0
      %641 = vmatprep.subr.mxu0 0.0
      %642 = vmatpush1.msra.mxu0 0.0
      %643 = vmatprep.subr.mxu0 0.0
      %644 = vmatpush1.msra.mxu0 0.0
      %645 = vmatprep.subr.mxu0 0.0
      %646 = vmatpush1.msra.mxu0 0.0
      %647 = vmatprep.subr.mxu0 0.0
      %648 = vmatpush1.msra.mxu0 %v615
      %649 = vmatprep.subr.mxu0 0.0
      %650 = vmatpush2.msra.mxu0 0.0
      %651 = vmatprep.subr.mxu0 0.0
      %652 = vmatpush2.msra.mxu0 0.0
      %653 = vmatprep.subr.mxu0 0.0
      %654 = vmatpush2.msra.mxu0 0.0
      %655 = vmatprep.subr.mxu0 0.0
      %656 = vmatpush2.msra.mxu0 0.0
      %657 = vmatprep.subr.mxu0 0.0
      %658 = vmatpush2.msra.mxu0 0.0
      %659 = vmatprep.subr.mxu0 0.0
      %660 = vmatpush2.msra.mxu0 0.0
      %661 = vmatprep.subr.mxu0 0.0
      %662 = vmatpush2.msra.mxu0 0.0
      %663 = vmatprep.subr.mxu0 0.0
      %664 = vmatpush2.msra.mxu0 0.0
      %665 = vmatprep.subr.mxu0 0.0
      %666 = vmatpush2.msra.mxu0 0.0
      %667 = vmatprep.subr.mxu0 0.0
      %668 = vmatpush2.msra.mxu0 0.0
      %669 = vmatprep.subr.mxu0 0.0
      %670 = vmatpush2.msra.mxu0 0.0
      %671 = vmatprep.subr.mxu0 0.0
      %672 = vmatpush2.msra.mxu0 0.0
      %673 = vmatprep.subr.mxu0 0.0
      %674 = vmatpush2.msra.mxu0 0.0
      %675 = vmatprep.subr.mxu0 0.0
      %676 = vmatpush2.msra.mxu0 0.0
      %677 = vmatprep.subr.mxu0 0.0
      %678 = vmatpush2.msra.mxu0 0.0
      %679 = vmatprep.subr.mxu0 0.0
      %680 = vmatpush2.msra.mxu0 0.0
      %681 = vmatprep.mubr.f32.mxu0 0.0
      %682 = vmatmul.mubr.f32.gmra.mxu0 %v518
      %v683 = vpop.f32.mrf.mxu0
      %v684 = vadd.f32 %v514, %v683
      %v685 = vpop.f32.mrf.mxu0
      %686 = vmatprep.mubr.f32.mxu0 0.0
      %687 = vmatmul.mubr.f32.gmra.mxu0 %v521
      %v688 = vpop.f32.mrf.mxu0
      %v689 = vadd.f32 %v514, %v688
      %v690 = vpop.f32.mrf.mxu0
      %691 = vmatprep.mubr.f32.mxu0 0.0
      %692 = vmatmul.mubr.f32.gmra.mxu0 %v524
      %v693 = vpop.f32.mrf.mxu0
      %v694 = vadd.f32 %v514, %v693
      %v695 = vpop.f32.mrf.mxu0
      %696 = vmatprep.mubr.f32.mxu0 0.0
      %697 = vmatmul.mubr.f32.gmra.mxu0 %v527
      %v698 = vpop.f32.mrf.mxu0
      %v699 = vadd.f32 %v514, %v698
      %v700 = vpop.f32.mrf.mxu0
      %701 = vmatprep.mubr.f32.mxu0 0.0
      %702 = vmatmul.mubr.f32.gmra.mxu0 %v530
      %v703 = vpop.f32.mrf.mxu0
      %v704 = vadd.f32 %v514, %v703
      %v705 = vpop.f32.mrf.mxu0
      %706 = vmatprep.mubr.f32.mxu0 0.0
      %707 = vmatmul.mubr.f32.gmra.mxu0 %v533
      %v708 = vpop.f32.mrf.mxu0
      %v709 = vadd.f32 %v514, %v708
      %v710 = vpop.f32.mrf.mxu0
      %711 = vmatprep.mubr.f32.mxu0 0.0
      %712 = vmatmul.mubr.f32.gmra.mxu0 %v536
      %v713 = vpop.f32.mrf.mxu0
      %v714 = vadd.f32 %v514, %v713
      %v715 = vpop.f32.mrf.mxu0
      %716 = vmatprep.mubr.f32.mxu0 0.0
      %717 = vmatmul.mubr.f32.gmra.mxu0 %v539
      %v718 = vpop.f32.mrf.mxu0
      %v719 = vadd.f32 %v514, %v718
      %v720 = vpop.f32.mrf.mxu0
      %721 = vmatprep.mubr.f32.mxu0 0.0
      %722 = vmatmul.mubr.f32.gmra.mxu0 %v542
      %v723 = vpop.f32.mrf.mxu0
      %v724 = vadd.f32 %v514, %v723
      %v725 = vpop.f32.mrf.mxu0
      %726 = vmatprep.mubr.f32.mxu0 0.0
      %727 = vmatmul.mubr.f32.gmra.mxu0 %v545
      %v728 = vpop.f32.mrf.mxu0
      %v729 = vadd.f32 %v514, %v728
      %v730 = vpop.f32.mrf.mxu0
      %731 = vmatprep.mubr.f32.mxu0 0.0
      %732 = vmatmul.mubr.f32.gmra.mxu0 %v548
      %v733 = vpop.f32.mrf.mxu0
      %v734 = vadd.f32 %v514, %v733
      %v735 = vpop.f32.mrf.mxu0
      %736 = vmatprep.mubr.f32.mxu0 0.0
      %737 = vmatmul.mubr.f32.gmra.mxu0 %v551
      %v738 = vpop.f32.mrf.mxu0
      %v739 = vadd.f32 %v514, %v738
      %v740 = vpop.f32.mrf.mxu0
      %741 = vmatprep.mubr.f32.mxu0 0.0
      %742 = vmatmul.mubr.f32.gmra.mxu0 %v554
      %v743 = vpop.f32.mrf.mxu0
      %v744 = vadd.f32 %v514, %v743
      %v745 = vpop.f32.mrf.mxu0
      %746 = vmatprep.mubr.f32.mxu0 0.0
      %747 = vmatmul.mubr.f32.gmra.mxu0 %v557
      %v748 = vpop.f32.mrf.mxu0
      %v749 = vadd.f32 %v514, %v748
      %v750 = vpop.f32.mrf.mxu0
      %751 = vmatprep.mubr.f32.mxu0 0.0
      %752 = vmatmul.mubr.f32.gmra.mxu0 %v560
      %v753 = vpop.f32.mrf.mxu0
      %v754 = vadd.f32 %v514, %v753
      %v755 = vpop.f32.mrf.mxu0
      %756 = vmatprep.mubr.f32.mxu0 0.0
      %757 = vmatmul.mubr.f32.gmra.mxu0 %v563
      %v758 = vpop.f32.mrf.mxu0
      %v759 = vadd.f32 %v514, %v758
      %v760 = vpop.f32.mrf.mxu0
      %761 = vmatprep.mubr.f32.mxu0 0.0
      %762 = vmatmul.mubr.f32.gmra.mxu0 %v566
      %v763 = vpop.f32.mrf.mxu0
      %v764 = vadd.f32 %v514, %v763
      %v765 = vpop.f32.mrf.mxu0
      %766 = vmatprep.mubr.f32.mxu0 0.0
      %767 = vmatmul.mubr.f32.gmra.mxu0 %v569
      %v768 = vpop.f32.mrf.mxu0
      %v769 = vadd.f32 %v514, %v768
      %v770 = vpop.f32.mrf.mxu0
      %771 = vmatprep.mubr.f32.mxu0 0.0
      %772 = vmatmul.mubr.f32.gmra.mxu0 %v572
      %v773 = vpop.f32.mrf.mxu0
      %v774 = vadd.f32 %v514, %v773
      %v775 = vpop.f32.mrf.mxu0
      %776 = vmatprep.mubr.f32.mxu0 0.0
      %777 = vmatmul.mubr.f32.gmra.mxu0 %v575
      %v778 = vpop.f32.mrf.mxu0
      %v779 = vadd.f32 %v514, %v778
      %v780 = vpop.f32.mrf.mxu0
      %781 = vmatprep.mubr.f32.mxu0 0.0
      %782 = vmatmul.mubr.f32.gmra.mxu0 %v578
      %v783 = vpop.f32.mrf.mxu0
      %v784 = vadd.f32 %v514, %v783
      %v785 = vpop.f32.mrf.mxu0
      %786 = vmatprep.mubr.f32.mxu0 0.0
      %787 = vmatmul.mubr.f32.gmra.mxu0 %v581
      %v788 = vpop.f32.mrf.mxu0
      %v789 = vadd.f32 %v514, %v788
      %v790 = vpop.f32.mrf.mxu0
      %791 = vmatprep.mubr.f32.mxu0 0.0
      %792 = vmatmul.mubr.f32.gmra.mxu0 %v584
      %v793 = vpop.f32.mrf.mxu0
      %v794 = vadd.f32 %v514, %v793
      %v795 = vpop.f32.mrf.mxu0
      %796 = vmatprep.mubr.f32.mxu0 0.0
      %797 = vmatmul.mubr.f32.gmra.mxu0 %v587
      %v798 = vpop.f32.mrf.mxu0
      %v799 = vadd.f32 %v514, %v798
      %v800 = vpop.f32.mrf.mxu0
      %801 = vmatprep.mubr.f32.mxu0 0.0
      %802 = vmatmul.mubr.f32.gmra.mxu0 %v590
      %v803 = vpop.f32.mrf.mxu0
      %v804 = vadd.f32 %v514, %v803
      %v805 = vpop.f32.mrf.mxu0
      %806 = vmatprep.mubr.f32.mxu0 0.0
      %807 = vmatmul.mubr.f32.gmra.mxu0 %v593
      %v808 = vpop.f32.mrf.mxu0
      %v809 = vadd.f32 %v514, %v808
      %v810 = vpop.f32.mrf.mxu0
      %811 = vmatprep.mubr.f32.mxu0 0.0
      %812 = vmatmul.mubr.f32.gmra.mxu0 %v596
      %v813 = vpop.f32.mrf.mxu0
      %v814 = vadd.f32 %v514, %v813
      %v815 = vpop.f32.mrf.mxu0
      %816 = vmatprep.mubr.f32.mxu0 0.0
      %817 = vmatmul.mubr.f32.gmra.mxu0 %v599
      %v818 = vpop.f32.mrf.mxu0
      %v819 = vadd.f32 %v514, %v818
      %v820 = vpop.f32.mrf.mxu0
      %821 = vmatprep.mubr.f32.mxu0 0.0
      %822 = vmatmul.mubr.f32.gmra.mxu0 %v602
      %v823 = vpop.f32.mrf.mxu0
      %v824 = vadd.f32 %v514, %v823
      %v825 = vpop.f32.mrf.mxu0
      %826 = vmatprep.mubr.f32.mxu0 0.0
      %827 = vmatmul.mubr.f32.gmra.mxu0 %v605
      %v828 = vpop.f32.mrf.mxu0
      %v829 = vadd.f32 %v514, %v828
      %v830 = vpop.f32.mrf.mxu0
      %831 = vmatprep.mubr.f32.mxu0 0.0
      %832 = vmatmul.mubr.f32.gmra.mxu0 %v608
      %v833 = vpop.f32.mrf.mxu0
      %v834 = vadd.f32 %v514, %v833
      %v835 = vpop.f32.mrf.mxu0
      %836 = vmatprep.mubr.f32.mxu0 0.0
      %837 = vmatmul.mubr.f32.gmra.mxu0 %v611
      %v838 = vpop.f32.mrf.mxu0
      %v839 = vadd.f32 %v514, %v838
      %v840 = vpop.f32.mrf.mxu0
      %841 = vdwg.mxu0
      %v842 = vmax.f32 %v684, 0.0
      %v843 = vmax.f32 %v689, 0.0
      %v844 = vmax.f32 %v694, 0.0
      %v845 = vmax.f32 %v699, 0.0
      %v846 = vmax.f32 %v704, 0.0
      %v847 = vmax.f32 %v709, 0.0
      %v848 = vmax.f32 %v714, 0.0
      %v849 = vmax.f32 %v719, 0.0
      %v850 = vmax.f32 %v724, 0.0
      %v851 = vmax.f32 %v729, 0.0
      %v852 = vmax.f32 %v734, 0.0
      %v853 = vmax.f32 %v739, 0.0
      %v854 = vmax.f32 %v744, 0.0
      %v855 = vmax.f32 %v749, 0.0
      %v856 = vmax.f32 %v754, 0.0
      %v857 = vmax.f32 %v759, 0.0
      %v858 = vmax.f32 %v764, 0.0
      %v859 = vmax.f32 %v769, 0.0
      %v860 = vmax.f32 %v774, 0.0
      %v861 = vmax.f32 %v779, 0.0
      %v862 = vmax.f32 %v784, 0.0
      %v863 = vmax.f32 %v789, 0.0
      %v864 = vmax.f32 %v794, 0.0
      %v865 = vmax.f32 %v799, 0.0
      %v866 = vmax.f32 %v804, 0.0
      %v867 = vmax.f32 %v809, 0.0
      %v868 = vmax.f32 %v814, 0.0
      %v869 = vmax.f32 %v819, 0.0
      %v870 = vmax.f32 %v824, 0.0
      %v871 = vmax.f32 %v829, 0.0
      %v872 = vmax.f32 %v834, 0.0
      %v873 = vmax.f32 %v839, 0.0
      %v874 = vpack.c.bf16 %v843, %v842
      %v875 = vpack.c.bf16 %v845, %v844
      %v876 = vpack.c.bf16 %v847, %v846
      %v877 = vpack.c.bf16 %v849, %v848
      %v878 = vpack.c.bf16 %v851, %v850
      %v879 = vpack.c.bf16 %v853, %v852
      %v880 = vpack.c.bf16 %v855, %v854
      %v881 = vpack.c.bf16 %v857, %v856
      %v882 = vpack.c.bf16 %v859, %v858
      %v883 = vpack.c.bf16 %v861, %v860
      %v884 = vpack.c.bf16 %v863, %v862
      %v885 = vpack.c.bf16 %v865, %v864
      %v886 = vpack.c.bf16 %v867, %v866
      %v887 = vpack.c.bf16 %v869, %v868
      %v888 = vpack.c.bf16 %v871, %v870
      %v889 = vpack.c.bf16 %v873, %v872
      %v894 = vunpack.c.l.b16 %v487
      %v895 = vunpack.c.l.b16 %v488
      %v896 = vunpack.c.l.b16 %v489
      %v897 = vunpack.c.l.b16 %v490
      %v898 = vpack.c.b16 %v895, %v894
      %v899 = vpack.c.b16 %v897, %v896
      %vm902 = vcmask 261120
      %v904 = vsel %vm902, %v874, 0
      %v907 = vsel %vm902, %v875, 0
      %v910 = vsel %vm902, %v876, 0
      %v913 = vsel %vm902, %v877, 0
      %v916 = vsel %vm902, %v878, 0
      %v919 = vsel %vm902, %v879, 0
      %v922 = vsel %vm902, %v880, 0
      %v925 = vsel %vm902, %v881, 0
      %v928 = vsel %vm902, %v882, 0
      %v931 = vsel %vm902, %v883, 0
      %v934 = vsel %vm902, %v884, 0
      %v937 = vsel %vm902, %v885, 0
      %v940 = vsel %vm902, %v886, 0
      %v943 = vsel %vm902, %v887, 0
      %v946 = vsel %vm902, %v888, 0
      %v949 = vsel %vm902, %v889, 0
      %951 = vmatprep.subr.bf16.mxu0 0
      %952 = vmatpush1.bf16.msra.mxu0 0
      %953 = vmatprep.subr.bf16.mxu0 0
      %954 = vmatpush1.bf16.msra.mxu0 0
      %955 = vmatprep.subr.bf16.mxu0 0
      %956 = vmatpush1.bf16.msra.mxu0 0
      %957 = vmatprep.subr.bf16.mxu0 0
      %958 = vmatpush1.bf16.msra.mxu0 0
      %959 = vmatprep.subr.bf16.mxu0 0
      %960 = vmatpush1.bf16.msra.mxu0 0
      %961 = vmatprep.subr.bf16.mxu0 0
      %962 = vmatpush1.bf16.msra.mxu0 0
      %963 = vmatprep.subr.bf16.mxu0 0
      %964 = vmatpush1.bf16.msra.mxu0 %v899
      %965 = vmatprep.subr.bf16.mxu0 0
      %966 = vmatpush1.bf16.msra.mxu0 %v898
      %967 = vmatprep.subr.bf16.mxu0 0
      %968 = vmatpush2.bf16.msra.mxu0 0
      %969 = vmatprep.subr.bf16.mxu0 0
      %970 = vmatpush2.bf16.msra.mxu0 0
      %971 = vmatprep.subr.bf16.mxu0 0
      %972 = vmatpush2.bf16.msra.mxu0 0
      %973 = vmatprep.subr.bf16.mxu0 0
      %974 = vmatpush2.bf16.msra.mxu0 0
      %975 = vmatprep.subr.bf16.mxu0 0
      %976 = vmatpush2.bf16.msra.mxu0 0
      %977 = vmatprep.subr.bf16.mxu0 0
      %978 = vmatpush2.bf16.msra.mxu0 0
      %979 = vmatprep.subr.bf16.mxu0 0
      %980 = vmatpush2.bf16.msra.mxu0 0
      %981 = vmatprep.subr.bf16.mxu0 0
      %982 = vmatpush2.bf16.msra.mxu0 0
      %983 = vmatprep.mubr.bf16.mxu0 0
      %984 = vmatmul.mubr.bf16.gmra.mxu0 %v904
      %v985 = vpop.f32.mrf.mxu0
      %v986 = vadd.f32 0.0, %v985
      %v987 = vpop.f32.mrf.mxu0
      %v988 = vpop.f32.mrf.mxu0
      %v989 = vadd.f32 0.0, %v988
      %v990 = vpop.f32.mrf.mxu0
      %991 = vmatprep.mubr.bf16.mxu0 0
      %992 = vmatmul.mubr.bf16.gmra.mxu0 %v907
      %v993 = vpop.f32.mrf.mxu0
      %v994 = vadd.f32 0.0, %v993
      %v995 = vpop.f32.mrf.mxu0
      %v996 = vpop.f32.mrf.mxu0
      %v997 = vadd.f32 0.0, %v996
      %v998 = vpop.f32.mrf.mxu0
      %999 = vmatprep.mubr.bf16.mxu0 0
      %1000 = vmatmul.mubr.bf16.gmra.mxu0 %v910
      %v1001 = vpop.f32.mrf.mxu0
      %v1002 = vadd.f32 0.0, %v1001
      %v1003 = vpop.f32.mrf.mxu0
      %v1004 = vpop.f32.mrf.mxu0
      %v1005 = vadd.f32 0.0, %v1004
      %v1006 = vpop.f32.mrf.mxu0
      %1007 = vmatprep.mubr.bf16.mxu0 0
      %1008 = vmatmul.mubr.bf16.gmra.mxu0 %v913
      %v1009 = vpop.f32.mrf.mxu0
      %v1010 = vadd.f32 0.0, %v1009
      %v1011 = vpop.f32.mrf.mxu0
      %v1012 = vpop.f32.mrf.mxu0
      %v1013 = vadd.f32 0.0, %v1012
      %v1014 = vpop.f32.mrf.mxu0
      %1015 = vmatprep.mubr.bf16.mxu0 0
      %1016 = vmatmul.mubr.bf16.gmra.mxu0 %v916
      %v1017 = vpop.f32.mrf.mxu0
      %v1018 = vadd.f32 0.0, %v1017
      %v1019 = vpop.f32.mrf.mxu0
      %v1020 = vpop.f32.mrf.mxu0
      %v1021 = vadd.f32 0.0, %v1020
      %v1022 = vpop.f32.mrf.mxu0
      %1023 = vmatprep.mubr.bf16.mxu0 0
      %1024 = vmatmul.mubr.bf16.gmra.mxu0 %v919
      %v1025 = vpop.f32.mrf.mxu0
      %v1026 = vadd.f32 0.0, %v1025
      %v1027 = vpop.f32.mrf.mxu0
      %v1028 = vpop.f32.mrf.mxu0
      %v1029 = vadd.f32 0.0, %v1028
      %v1030 = vpop.f32.mrf.mxu0
      %1031 = vmatprep.mubr.bf16.mxu0 0
      %1032 = vmatmul.mubr.bf16.gmra.mxu0 %v922
      %v1033 = vpop.f32.mrf.mxu0
      %v1034 = vadd.f32 0.0, %v1033
      %v1035 = vpop.f32.mrf.mxu0
      %v1036 = vpop.f32.mrf.mxu0
      %v1037 = vadd.f32 0.0, %v1036
      %v1038 = vpop.f32.mrf.mxu0
      %1039 = vmatprep.mubr.bf16.mxu0 0
      %1040 = vmatmul.mubr.bf16.gmra.mxu0 %v925
      %v1041 = vpop.f32.mrf.mxu0
      %v1042 = vadd.f32 0.0, %v1041
      %v1043 = vpop.f32.mrf.mxu0
      %v1044 = vpop.f32.mrf.mxu0
      %v1045 = vadd.f32 0.0, %v1044
      %v1046 = vpop.f32.mrf.mxu0
      %1047 = vmatprep.mubr.bf16.mxu0 0
      %1048 = vmatmul.mubr.bf16.gmra.mxu0 %v928
      %v1049 = vpop.f32.mrf.mxu0
      %v1050 = vadd.f32 0.0, %v1049
      %v1051 = vpop.f32.mrf.mxu0
      %v1052 = vpop.f32.mrf.mxu0
      %v1053 = vadd.f32 0.0, %v1052
      %v1054 = vpop.f32.mrf.mxu0
      %1055 = vmatprep.mubr.bf16.mxu0 0
      %1056 = vmatmul.mubr.bf16.gmra.mxu0 %v931
      %v1057 = vpop.f32.mrf.mxu0
      %v1058 = vadd.f32 0.0, %v1057
      %v1059 = vpop.f32.mrf.mxu0
      %v1060 = vpop.f32.mrf.mxu0
      %v1061 = vadd.f32 0.0, %v1060
      %v1062 = vpop.f32.mrf.mxu0
      %1063 = vmatprep.mubr.bf16.mxu0 0
      %1064 = vmatmul.mubr.bf16.gmra.mxu0 %v934
      %v1065 = vpop.f32.mrf.mxu0
      %v1066 = vadd.f32 0.0, %v1065
      %v1067 = vpop.f32.mrf.mxu0
      %v1068 = vpop.f32.mrf.mxu0
      %v1069 = vadd.f32 0.0, %v1068
      %v1070 = vpop.f32.mrf.mxu0
      %1071 = vmatprep.mubr.bf16.mxu0 0
      %1072 = vmatmul.mubr.bf16.gmra.mxu0 %v937
      %v1073 = vpop.f32.mrf.mxu0
      %v1074 = vadd.f32 0.0, %v1073
      %v1075 = vpop.f32.mrf.mxu0
      %v1076 = vpop.f32.mrf.mxu0
      %v1077 = vadd.f32 0.0, %v1076
      %v1078 = vpop.f32.mrf.mxu0
      %1079 = vmatprep.mubr.bf16.mxu0 0
      %1080 = vmatmul.mubr.bf16.gmra.mxu0 %v940
      %v1081 = vpop.f32.mrf.mxu0
      %v1082 = vadd.f32 0.0, %v1081
      %v1083 = vpop.f32.mrf.mxu0
      %v1084 = vpop.f32.mrf.mxu0
      %v1085 = vadd.f32 0.0, %v1084
      %v1086 = vpop.f32.mrf.mxu0
      %1087 = vmatprep.mubr.bf16.mxu0 0
      %1088 = vmatmul.mubr.bf16.gmra.mxu0 %v943
      %v1089 = vpop.f32.mrf.mxu0
      %v1090 = vadd.f32 0.0, %v1089
      %v1091 = vpop.f32.mrf.mxu0
      %v1092 = vpop.f32.mrf.mxu0
      %v1093 = vadd.f32 0.0, %v1092
      %v1094 = vpop.f32.mrf.mxu0
      %1095 = vmatprep.mubr.bf16.mxu0 0
      %1096 = vmatmul.mubr.bf16.gmra.mxu0 %v946
      %v1097 = vpop.f32.mrf.mxu0
      %v1098 = vadd.f32 0.0, %v1097
      %v1099 = vpop.f32.mrf.mxu0
      %v1100 = vpop.f32.mrf.mxu0
      %v1101 = vadd.f32 0.0, %v1100
      %v1102 = vpop.f32.mrf.mxu0
      %1103 = vmatprep.mubr.bf16.mxu0 0
      %1104 = vmatmul.mubr.bf16.gmra.mxu0 %v949
      %v1105 = vpop.f32.mrf.mxu0
      %v1106 = vadd.f32 0.0, %v1105
      %v1107 = vpop.f32.mrf.mxu0
      %v1108 = vpop.f32.mrf.mxu0
      %v1109 = vadd.f32 0.0, %v1108
      %v1110 = vpop.f32.mrf.mxu0
      %1111 = vdwg.mxu0
      %v1144 = vunpack.c.l.b16 %v445
      %v1145 = vunpack.c.l.b16 %v446
      %v1146 = vunpack.c.l.b16 %v447
      %v1147 = vunpack.c.l.b16 %v448
      %v1148 = vunpack.c.l.b16 %v449
      %v1149 = vunpack.c.l.b16 %v450
      %v1150 = vunpack.c.l.b16 %v451
      %v1151 = vunpack.c.l.b16 %v452
      %v1152 = vunpack.c.l.b16 %v453
      %v1153 = vunpack.c.l.b16 %v454
      %v1154 = vunpack.c.l.b16 %v455
      %v1155 = vunpack.c.l.b16 %v456
      %v1156 = vunpack.c.l.b16 %v457
      %v1157 = vunpack.c.l.b16 %v458
      %v1158 = vunpack.c.l.b16 %v459
      %v1159 = vunpack.c.l.b16 %v460
      %v1160 = vunpack.c.l.b16 %v461
      %v1161 = vunpack.c.l.b16 %v462
      %v1162 = vunpack.c.l.b16 %v463
      %v1163 = vunpack.c.l.b16 %v464
      %v1164 = vunpack.c.l.b16 %v465
      %v1165 = vunpack.c.l.b16 %v466
      %v1166 = vunpack.c.l.b16 %v467
      %v1167 = vunpack.c.l.b16 %v468
      %v1168 = vunpack.c.l.b16 %v469
      %v1169 = vunpack.c.l.b16 %v470
      %v1170 = vunpack.c.l.b16 %v471
      %v1171 = vunpack.c.l.b16 %v472
      %v1172 = vunpack.c.l.b16 %v473
      %v1173 = vunpack.c.l.b16 %v474
      %v1174 = vunpack.c.l.b16 %v475
      %v1175 = vunpack.c.l.b16 %v476
      %v1176 = vpack.c.b16 %v1145, %v1144
      %v1177 = vpack.c.b16 %v1147, %v1146
      %v1178 = vpack.c.b16 %v1149, %v1148
      %v1179 = vpack.c.b16 %v1151, %v1150
      %v1180 = vpack.c.b16 %v1153, %v1152
      %v1181 = vpack.c.b16 %v1155, %v1154
      %v1182 = vpack.c.b16 %v1157, %v1156
      %v1183 = vpack.c.b16 %v1159, %v1158
      %v1184 = vpack.c.b16 %v1161, %v1160
      %v1185 = vpack.c.b16 %v1163, %v1162
      %v1186 = vpack.c.b16 %v1165, %v1164
      %v1187 = vpack.c.b16 %v1167, %v1166
      %v1188 = vpack.c.b16 %v1169, %v1168
      %v1189 = vpack.c.b16 %v1171, %v1170
      %v1190 = vpack.c.b16 %v1173, %v1172
      %v1191 = vpack.c.b16 %v1175, %v1174
      %v1200 = vunpack.c.l.b16 %v479
      %v1201 = vunpack.c.l.b16 %v480
      %v1202 = vunpack.c.l.b16 %v481
      %v1203 = vunpack.c.l.b16 %v482
      %v1204 = vunpack.c.l.b16 %v483
      %v1205 = vunpack.c.l.b16 %v484
      %v1206 = vunpack.c.l.b16 %v485
      %v1207 = vunpack.c.l.b16 %v486
      %v1208 = vpack.c.b16 %v1201, %v1200
      %v1209 = vpack.c.b16 %v1203, %v1202
      %v1210 = vpack.c.b16 %v1205, %v1204
      %v1211 = vpack.c.b16 %v1207, %v1206
      %vm1216 = vcmask 523264
      %v1218 = vsel %vm1216, %v1176, 0
      %v1221 = vsel %vm1216, %v1177, 0
      %v1224 = vsel %vm1216, %v1178, 0
      %v1227 = vsel %vm1216, %v1179, 0
      %v1230 = vsel %vm1216, %v1180, 0
      %v1233 = vsel %vm1216, %v1181, 0
      %v1236 = vsel %vm1216, %v1182, 0
      %v1239 = vsel %vm1216, %v1183, 0
      %v1242 = vsel %vm1216, %v1184, 0
      %v1245 = vsel %vm1216, %v1185, 0
      %v1248 = vsel %vm1216, %v1186, 0
      %v1251 = vsel %vm1216, %v1187, 0
      %v1254 = vsel %vm1216, %v1188, 0
      %v1257 = vsel %vm1216, %v1189, 0
      %v1260 = vsel %vm1216, %v1190, 0
      %v1263 = vsel %vm1216, %v1191, 0
      %1265 = vmatprep.subr.bf16.mxu0 0
      %1266 = vmatpush1.bf16.msra.mxu0 0
      %1267 = vmatprep.subr.bf16.mxu0 0
      %1268 = vmatpush1.bf16.msra.mxu0 0
      %1269 = vmatprep.subr.bf16.mxu0 0
      %1270 = vmatpush1.bf16.msra.mxu0 0
      %1271 = vmatprep.subr.bf16.mxu0 0
      %1272 = vmatpush1.bf16.msra.mxu0 0
      %1273 = vmatprep.subr.bf16.mxu0 0
      %1274 = vmatpush1.bf16.msra.mxu0 %v1211
      %1275 = vmatprep.subr.bf16.mxu0 0
      %1276 = vmatpush1.bf16.msra.mxu0 %v1210
      %1277 = vmatprep.subr.bf16.mxu0 0
      %1278 = vmatpush1.bf16.msra.mxu0 %v1209
      %1279 = vmatprep.subr.bf16.mxu0 0
      %1280 = vmatpush1.bf16.msra.mxu0 %v1208
      %1281 = vmatprep.subr.bf16.mxu0 0
      %1282 = vmatpush2.bf16.msra.mxu0 0
      %1283 = vmatprep.subr.bf16.mxu0 0
      %1284 = vmatpush2.bf16.msra.mxu0 0
      %1285 = vmatprep.subr.bf16.mxu0 0
      %1286 = vmatpush2.bf16.msra.mxu0 0
      %1287 = vmatprep.subr.bf16.mxu0 0
      %1288 = vmatpush2.bf16.msra.mxu0 0
      %1289 = vmatprep.subr.bf16.mxu0 0
      %1290 = vmatpush2.bf16.msra.mxu0 0
      %1291 = vmatprep.subr.bf16.mxu0 0
      %1292 = vmatpush2.bf16.msra.mxu0 0
      %1293 = vmatprep.subr.bf16.mxu0 0
      %1294 = vmatpush2.bf16.msra.mxu0 0
      %1295 = vmatprep.subr.bf16.mxu0 0
      %1296 = vmatpush2.bf16.msra.mxu0 0
      %1297 = vmatprep.mubr.bf16.mxu0 0
      %1298 = vmatmul.mubr.bf16.gmra.mxu0 %v1218
      %v1299 = vpop.f32.mrf.mxu0
      %v1300 = vadd.f32 %v986, %v1299
      %v1301 = vpop.f32.mrf.mxu0
      %v1302 = vpop.f32.mrf.mxu0
      %v1303 = vadd.f32 %v989, %v1302
      %v1304 = vpop.f32.mrf.mxu0
      %1305 = vmatprep.mubr.bf16.mxu0 0
      %1306 = vmatmul.mubr.bf16.gmra.mxu0 %v1221
      %v1307 = vpop.f32.mrf.mxu0
      %v1308 = vadd.f32 %v994, %v1307
      %v1309 = vpop.f32.mrf.mxu0
      %v1310 = vpop.f32.mrf.mxu0
      %v1311 = vadd.f32 %v997, %v1310
      %v1312 = vpop.f32.mrf.mxu0
      %1313 = vmatprep.mubr.bf16.mxu0 0
      %1314 = vmatmul.mubr.bf16.gmra.mxu0 %v1224
      %v1315 = vpop.f32.mrf.mxu0
      %v1316 = vadd.f32 %v1002, %v1315
      %v1317 = vpop.f32.mrf.mxu0
      %v1318 = vpop.f32.mrf.mxu0
      %v1319 = vadd.f32 %v1005, %v1318
      %v1320 = vpop.f32.mrf.mxu0
      %1321 = vmatprep.mubr.bf16.mxu0 0
      %1322 = vmatmul.mubr.bf16.gmra.mxu0 %v1227
      %v1323 = vpop.f32.mrf.mxu0
      %v1324 = vadd.f32 %v1010, %v1323
      %v1325 = vpop.f32.mrf.mxu0
      %v1326 = vpop.f32.mrf.mxu0
      %v1327 = vadd.f32 %v1013, %v1326
      %v1328 = vpop.f32.mrf.mxu0
      %1329 = vmatprep.mubr.bf16.mxu0 0
      %1330 = vmatmul.mubr.bf16.gmra.mxu0 %v1230
      %v1331 = vpop.f32.mrf.mxu0
      %v1332 = vadd.f32 %v1018, %v1331
      %v1333 = vpop.f32.mrf.mxu0
      %v1334 = vpop.f32.mrf.mxu0
      %v1335 = vadd.f32 %v1021, %v1334
      %v1336 = vpop.f32.mrf.mxu0
      %1337 = vmatprep.mubr.bf16.mxu0 0
      %1338 = vmatmul.mubr.bf16.gmra.mxu0 %v1233
      %v1339 = vpop.f32.mrf.mxu0
      %v1340 = vadd.f32 %v1026, %v1339
      %v1341 = vpop.f32.mrf.mxu0
      %v1342 = vpop.f32.mrf.mxu0
      %v1343 = vadd.f32 %v1029, %v1342
      %v1344 = vpop.f32.mrf.mxu0
      %1345 = vmatprep.mubr.bf16.mxu0 0
      %1346 = vmatmul.mubr.bf16.gmra.mxu0 %v1236
      %v1347 = vpop.f32.mrf.mxu0
      %v1348 = vadd.f32 %v1034, %v1347
      %v1349 = vpop.f32.mrf.mxu0
      %v1350 = vpop.f32.mrf.mxu0
      %v1351 = vadd.f32 %v1037, %v1350
      %v1352 = vpop.f32.mrf.mxu0
      %1353 = vmatprep.mubr.bf16.mxu0 0
      %1354 = vmatmul.mubr.bf16.gmra.mxu0 %v1239
      %v1355 = vpop.f32.mrf.mxu0
      %v1356 = vadd.f32 %v1042, %v1355
      %v1357 = vpop.f32.mrf.mxu0
      %v1358 = vpop.f32.mrf.mxu0
      %v1359 = vadd.f32 %v1045, %v1358
      %v1360 = vpop.f32.mrf.mxu0
      %1361 = vmatprep.mubr.bf16.mxu0 0
      %1362 = vmatmul.mubr.bf16.gmra.mxu0 %v1242
      %v1363 = vpop.f32.mrf.mxu0
      %v1364 = vadd.f32 %v1050, %v1363
      %v1365 = vpop.f32.mrf.mxu0
      %v1366 = vpop.f32.mrf.mxu0
      %v1367 = vadd.f32 %v1053, %v1366
      %v1368 = vpop.f32.mrf.mxu0
      %1369 = vmatprep.mubr.bf16.mxu0 0
      %1370 = vmatmul.mubr.bf16.gmra.mxu0 %v1245
      %v1371 = vpop.f32.mrf.mxu0
      %v1372 = vadd.f32 %v1058, %v1371
      %v1373 = vpop.f32.mrf.mxu0
      %v1374 = vpop.f32.mrf.mxu0
      %v1375 = vadd.f32 %v1061, %v1374
      %v1376 = vpop.f32.mrf.mxu0
      %1377 = vmatprep.mubr.bf16.mxu0 0
      %1378 = vmatmul.mubr.bf16.gmra.mxu0 %v1248
      %v1379 = vpop.f32.mrf.mxu0
      %v1380 = vadd.f32 %v1066, %v1379
      %v1381 = vpop.f32.mrf.mxu0
      %v1382 = vpop.f32.mrf.mxu0
      %v1383 = vadd.f32 %v1069, %v1382
      %v1384 = vpop.f32.mrf.mxu0
      %1385 = vmatprep.mubr.bf16.mxu0 0
      %1386 = vmatmul.mubr.bf16.gmra.mxu0 %v1251
      %v1387 = vpop.f32.mrf.mxu0
      %v1388 = vadd.f32 %v1074, %v1387
      %v1389 = vpop.f32.mrf.mxu0
      %v1390 = vpop.f32.mrf.mxu0
      %v1391 = vadd.f32 %v1077, %v1390
      %v1392 = vpop.f32.mrf.mxu0
      %1393 = vmatprep.mubr.bf16.mxu0 0
      %1394 = vmatmul.mubr.bf16.gmra.mxu0 %v1254
      %v1395 = vpop.f32.mrf.mxu0
      %v1396 = vadd.f32 %v1082, %v1395
      %v1397 = vpop.f32.mrf.mxu0
      %v1398 = vpop.f32.mrf.mxu0
      %v1399 = vadd.f32 %v1085, %v1398
      %v1400 = vpop.f32.mrf.mxu0
      %1401 = vmatprep.mubr.bf16.mxu0 0
      %1402 = vmatmul.mubr.bf16.gmra.mxu0 %v1257
      %v1403 = vpop.f32.mrf.mxu0
      %v1404 = vadd.f32 %v1090, %v1403
      %v1405 = vpop.f32.mrf.mxu0
      %v1406 = vpop.f32.mrf.mxu0
      %v1407 = vadd.f32 %v1093, %v1406
      %v1408 = vpop.f32.mrf.mxu0
      %1409 = vmatprep.mubr.bf16.mxu0 0
      %1410 = vmatmul.mubr.bf16.gmra.mxu0 %v1260
      %v1411 = vpop.f32.mrf.mxu0
      %v1412 = vadd.f32 %v1098, %v1411
      %v1413 = vpop.f32.mrf.mxu0
      %v1414 = vpop.f32.mrf.mxu0
      %v1415 = vadd.f32 %v1101, %v1414
      %v1416 = vpop.f32.mrf.mxu0
      %1417 = vmatprep.mubr.bf16.mxu0 0
      %1418 = vmatmul.mubr.bf16.gmra.mxu0 %v1263
      %v1419 = vpop.f32.mrf.mxu0
      %v1420 = vadd.f32 %v1106, %v1419
      %v1421 = vpop.f32.mrf.mxu0
      %v1422 = vpop.f32.mrf.mxu0
      %v1423 = vadd.f32 %v1109, %v1422
      %v1424 = vpop.f32.mrf.mxu0
      %1425 = vdwg.mxu0
      %v1427 = vlaneseq
      %v1428 = vshrl.u32 %v1427, 7
      %v1429 = vsub.s32 0, %v1428
      %v1430 = vrot.slane %v491, %v1429
      %v1432 = vadd.f32 %v1300, %v1430
      %v1433 = vadd.f32 %v1303, %v1430
      %v1434 = vadd.f32 %v1308, %v1430
      %v1435 = vadd.f32 %v1311, %v1430
      %v1436 = vadd.f32 %v1316, %v1430
      %v1437 = vadd.f32 %v1319, %v1430
      %v1438 = vadd.f32 %v1324, %v1430
      %v1439 = vadd.f32 %v1327, %v1430
      %v1440 = vadd.f32 %v1332, %v1430
      %v1441 = vadd.f32 %v1335, %v1430
      %v1442 = vadd.f32 %v1340, %v1430
      %v1443 = vadd.f32 %v1343, %v1430
      %v1444 = vadd.f32 %v1348, %v1430
      %v1445 = vadd.f32 %v1351, %v1430
      %v1446 = vadd.f32 %v1356, %v1430
      %v1447 = vadd.f32 %v1359, %v1430
      %v1448 = vadd.f32 %v1364, %v1430
      %v1449 = vadd.f32 %v1367, %v1430
      %v1450 = vadd.f32 %v1372, %v1430
      %v1451 = vadd.f32 %v1375, %v1430
      %v1452 = vadd.f32 %v1380, %v1430
      %v1453 = vadd.f32 %v1383, %v1430
      %v1454 = vadd.f32 %v1388, %v1430
      %v1455 = vadd.f32 %v1391, %v1430
      %v1456 = vadd.f32 %v1396, %v1430
      %v1457 = vadd.f32 %v1399, %v1430
      %v1458 = vadd.f32 %v1404, %v1430
      %v1459 = vadd.f32 %v1407, %v1430
      %v1460 = vadd.f32 %v1412, %v1430
      %v1461 = vadd.f32 %v1415, %v1430
      %v1462 = vadd.f32 %v1420, %v1430
      %v1463 = vadd.f32 %v1423, %v1430
      %v1464 = vmax.f32 %v1432, 0.0
      %v1465 = vmax.f32 %v1433, 0.0
      %v1466 = vmax.f32 %v1434, 0.0
      %v1467 = vmax.f32 %v1435, 0.0
      %v1468 = vmax.f32 %v1436, 0.0
      %v1469 = vmax.f32 %v1437, 0.0
      %v1470 = vmax.f32 %v1438, 0.0
      %v1471 = vmax.f32 %v1439, 0.0
      %v1472 = vmax.f32 %v1440, 0.0
      %v1473 = vmax.f32 %v1441, 0.0
      %v1474 = vmax.f32 %v1442, 0.0
      %v1475 = vmax.f32 %v1443, 0.0
      %v1476 = vmax.f32 %v1444, 0.0
      %v1477 = vmax.f32 %v1445, 0.0
      %v1478 = vmax.f32 %v1446, 0.0
      %v1479 = vmax.f32 %v1447, 0.0
      %v1480 = vmax.f32 %v1448, 0.0
      %v1481 = vmax.f32 %v1449, 0.0
      %v1482 = vmax.f32 %v1450, 0.0
      %v1483 = vmax.f32 %v1451, 0.0
      %v1484 = vmax.f32 %v1452, 0.0
      %v1485 = vmax.f32 %v1453, 0.0
      %v1486 = vmax.f32 %v1454, 0.0
      %v1487 = vmax.f32 %v1455, 0.0
      %v1488 = vmax.f32 %v1456, 0.0
      %v1489 = vmax.f32 %v1457, 0.0
      %v1490 = vmax.f32 %v1458, 0.0
      %v1491 = vmax.f32 %v1459, 0.0
      %v1492 = vmax.f32 %v1460, 0.0
      %v1493 = vmax.f32 %v1461, 0.0
      %v1494 = vmax.f32 %v1462, 0.0
      %v1495 = vmax.f32 %v1463, 0.0
      %v1496 = vpack.c.bf16 %v1465, %v1464
      %v1497 = vpack.c.bf16 %v1467, %v1466
      %v1498 = vpack.c.bf16 %v1469, %v1468
      %v1499 = vpack.c.bf16 %v1471, %v1470
      %v1500 = vpack.c.bf16 %v1473, %v1472
      %v1501 = vpack.c.bf16 %v1475, %v1474
      %v1502 = vpack.c.bf16 %v1477, %v1476
      %v1503 = vpack.c.bf16 %v1479, %v1478
      %v1504 = vpack.c.bf16 %v1481, %v1480
      %v1505 = vpack.c.bf16 %v1483, %v1482
      %v1506 = vpack.c.bf16 %v1485, %v1484
      %v1507 = vpack.c.bf16 %v1487, %v1486
      %v1508 = vpack.c.bf16 %v1489, %v1488
      %v1509 = vpack.c.bf16 %v1491, %v1490
      %v1510 = vpack.c.bf16 %v1493, %v1492
      %v1511 = vpack.c.bf16 %v1495, %v1494
      %v1513 = vlaneseq
      %v1514 = vshrl.u32 %v1513, 7
      %v1515 = vsub.s32 0, %v1514
      %v1516 = vrot.slane %v500, %v1515
      %v1526 = vunpack.c.l.b16 %v492
      %v1527 = vunpack.c.l.b16 %v493
      %v1528 = vunpack.c.l.b16 %v494
      %v1529 = vunpack.c.l.b16 %v495
      %v1530 = vunpack.c.l.b16 %v496
      %v1531 = vunpack.c.l.b16 %v497
      %v1532 = vunpack.c.l.b16 %v498
      %v1533 = vunpack.c.l.b16 %v499
      %v1534 = vpack.c.b16 %v1527, %v1526
      %v1535 = vpack.c.b16 %v1529, %v1528
      %v1536 = vpack.c.b16 %v1531, %v1530
      %v1537 = vpack.c.b16 %v1533, %v1532
      %v1543 = vsel %vm1216, %v1496, 0
      %v1546 = vsel %vm1216, %v1497, 0
      %v1549 = vsel %vm1216, %v1498, 0
      %v1552 = vsel %vm1216, %v1499, 0
      %v1555 = vsel %vm1216, %v1500, 0
      %v1558 = vsel %vm1216, %v1501, 0
      %v1561 = vsel %vm1216, %v1502, 0
      %v1564 = vsel %vm1216, %v1503, 0
      %v1567 = vsel %vm1216, %v1504, 0
      %v1570 = vsel %vm1216, %v1505, 0
      %v1573 = vsel %vm1216, %v1506, 0
      %v1576 = vsel %vm1216, %v1507, 0
      %v1579 = vsel %vm1216, %v1508, 0
      %v1582 = vsel %vm1216, %v1509, 0
      %v1585 = vsel %vm1216, %v1510, 0
      %v1588 = vsel %vm1216, %v1511, 0
      %1590 = vmatprep.subr.bf16.mxu0 0
      %1591 = vmatpush1.bf16.msra.mxu0 0
      %1592 = vmatprep.subr.bf16.mxu0 0
      %1593 = vmatpush1.bf16.msra.mxu0 0
      %1594 = vmatprep.subr.bf16.mxu0 0
      %1595 = vmatpush1.bf16.msra.mxu0 0
      %1596 = vmatprep.subr.bf16.mxu0 0
      %1597 = vmatpush1.bf16.msra.mxu0 0
      %1598 = vmatprep.subr.bf16.mxu0 0
      %1599 = vmatpush1.bf16.msra.mxu0 %v1537
      %1600 = vmatprep.subr.bf16.mxu0 0
      %1601 = vmatpush1.bf16.msra.mxu0 %v1536
      %1602 = vmatprep.subr.bf16.mxu0 0
      %1603 = vmatpush1.bf16.msra.mxu0 %v1535
      %1604 = vmatprep.subr.bf16.mxu0 0
      %1605 = vmatpush1.bf16.msra.mxu0 %v1534
      %1606 = vmatprep.subr.bf16.mxu0 0
      %1607 = vmatpush2.bf16.msra.mxu0 0
      %1608 = vmatprep.subr.bf16.mxu0 0
      %1609 = vmatpush2.bf16.msra.mxu0 0
      %1610 = vmatprep.subr.bf16.mxu0 0
      %1611 = vmatpush2.bf16.msra.mxu0 0
      %1612 = vmatprep.subr.bf16.mxu0 0
      %1613 = vmatpush2.bf16.msra.mxu0 0
      %1614 = vmatprep.subr.bf16.mxu0 0
      %1615 = vmatpush2.bf16.msra.mxu0 0
      %1616 = vmatprep.subr.bf16.mxu0 0
      %1617 = vmatpush2.bf16.msra.mxu0 0
      %1618 = vmatprep.subr.bf16.mxu0 0
      %1619 = vmatpush2.bf16.msra.mxu0 0
      %1620 = vmatprep.subr.bf16.mxu0 0
      %1621 = vmatpush2.bf16.msra.mxu0 0
      %1622 = vmatprep.mubr.bf16.mxu0 0
      %1623 = vmatmul.mubr.bf16.gmra.mxu0 %v1543
      %v1624 = vpop.f32.mrf.mxu0
      %v1625 = vadd.f32 %v1516, %v1624
      %v1626 = vpop.f32.mrf.mxu0
      %v1627 = vpop.f32.mrf.mxu0
      %v1628 = vadd.f32 %v1516, %v1627
      %v1629 = vpop.f32.mrf.mxu0
      %1630 = vmatprep.mubr.bf16.mxu0 0
      %1631 = vmatmul.mubr.bf16.gmra.mxu0 %v1546
      %v1632 = vpop.f32.mrf.mxu0
      %v1633 = vadd.f32 %v1516, %v1632
      %v1634 = vpop.f32.mrf.mxu0
      %v1635 = vpop.f32.mrf.mxu0
      %v1636 = vadd.f32 %v1516, %v1635
      %v1637 = vpop.f32.mrf.mxu0
      %1638 = vmatprep.mubr.bf16.mxu0 0
      %1639 = vmatmul.mubr.bf16.gmra.mxu0 %v1549
      %v1640 = vpop.f32.mrf.mxu0
      %v1641 = vadd.f32 %v1516, %v1640
      %v1642 = vpop.f32.mrf.mxu0
      %v1643 = vpop.f32.mrf.mxu0
      %v1644 = vadd.f32 %v1516, %v1643
      %v1645 = vpop.f32.mrf.mxu0
      %1646 = vmatprep.mubr.bf16.mxu0 0
      %1647 = vmatmul.mubr.bf16.gmra.mxu0 %v1552
      %v1648 = vpop.f32.mrf.mxu0
      %v1649 = vadd.f32 %v1516, %v1648
      %v1650 = vpop.f32.mrf.mxu0
      %v1651 = vpop.f32.mrf.mxu0
      %v1652 = vadd.f32 %v1516, %v1651
      %v1653 = vpop.f32.mrf.mxu0
      %1654 = vmatprep.mubr.bf16.mxu0 0
      %1655 = vmatmul.mubr.bf16.gmra.mxu0 %v1555
      %v1656 = vpop.f32.mrf.mxu0
      %v1657 = vadd.f32 %v1516, %v1656
      %v1658 = vpop.f32.mrf.mxu0
      %v1659 = vpop.f32.mrf.mxu0
      %v1660 = vadd.f32 %v1516, %v1659
      %v1661 = vpop.f32.mrf.mxu0
      %1662 = vmatprep.mubr.bf16.mxu0 0
      %1663 = vmatmul.mubr.bf16.gmra.mxu0 %v1558
      %v1664 = vpop.f32.mrf.mxu0
      %v1665 = vadd.f32 %v1516, %v1664
      %v1666 = vpop.f32.mrf.mxu0
      %v1667 = vpop.f32.mrf.mxu0
      %v1668 = vadd.f32 %v1516, %v1667
      %v1669 = vpop.f32.mrf.mxu0
      %1670 = vmatprep.mubr.bf16.mxu0 0
      %1671 = vmatmul.mubr.bf16.gmra.mxu0 %v1561
      %v1672 = vpop.f32.mrf.mxu0
      %v1673 = vadd.f32 %v1516, %v1672
      %v1674 = vpop.f32.mrf.mxu0
      %v1675 = vpop.f32.mrf.mxu0
      %v1676 = vadd.f32 %v1516, %v1675
      %v1677 = vpop.f32.mrf.mxu0
      %1678 = vmatprep.mubr.bf16.mxu0 0
      %1679 = vmatmul.mubr.bf16.gmra.mxu0 %v1564
      %v1680 = vpop.f32.mrf.mxu0
      %v1681 = vadd.f32 %v1516, %v1680
      %v1682 = vpop.f32.mrf.mxu0
      %v1683 = vpop.f32.mrf.mxu0
      %v1684 = vadd.f32 %v1516, %v1683
      %v1685 = vpop.f32.mrf.mxu0
      %1686 = vmatprep.mubr.bf16.mxu0 0
      %1687 = vmatmul.mubr.bf16.gmra.mxu0 %v1567
      %v1688 = vpop.f32.mrf.mxu0
      %v1689 = vadd.f32 %v1516, %v1688
      %v1690 = vpop.f32.mrf.mxu0
      %v1691 = vpop.f32.mrf.mxu0
      %v1692 = vadd.f32 %v1516, %v1691
      %v1693 = vpop.f32.mrf.mxu0
      %1694 = vmatprep.mubr.bf16.mxu0 0
      %1695 = vmatmul.mubr.bf16.gmra.mxu0 %v1570
      %v1696 = vpop.f32.mrf.mxu0
      %v1697 = vadd.f32 %v1516, %v1696
      %v1698 = vpop.f32.mrf.mxu0
      %v1699 = vpop.f32.mrf.mxu0
      %v1700 = vadd.f32 %v1516, %v1699
      %v1701 = vpop.f32.mrf.mxu0
      %1702 = vmatprep.mubr.bf16.mxu0 0
      %1703 = vmatmul.mubr.bf16.gmra.mxu0 %v1573
      %v1704 = vpop.f32.mrf.mxu0
      %v1705 = vadd.f32 %v1516, %v1704
      %v1706 = vpop.f32.mrf.mxu0
      %v1707 = vpop.f32.mrf.mxu0
      %v1708 = vadd.f32 %v1516, %v1707
      %v1709 = vpop.f32.mrf.mxu0
      %1710 = vmatprep.mubr.bf16.mxu0 0
      %1711 = vmatmul.mubr.bf16.gmra.mxu0 %v1576
      %v1712 = vpop.f32.mrf.mxu0
      %v1713 = vadd.f32 %v1516, %v1712
      %v1714 = vpop.f32.mrf.mxu0
      %v1715 = vpop.f32.mrf.mxu0
      %v1716 = vadd.f32 %v1516, %v1715
      %v1717 = vpop.f32.mrf.mxu0
      %1718 = vmatprep.mubr.bf16.mxu0 0
      %1719 = vmatmul.mubr.bf16.gmra.mxu0 %v1579
      %v1720 = vpop.f32.mrf.mxu0
      %v1721 = vadd.f32 %v1516, %v1720
      %v1722 = vpop.f32.mrf.mxu0
      %v1723 = vpop.f32.mrf.mxu0
      %v1724 = vadd.f32 %v1516, %v1723
      %v1725 = vpop.f32.mrf.mxu0
      %1726 = vmatprep.mubr.bf16.mxu0 0
      %1727 = vmatmul.mubr.bf16.gmra.mxu0 %v1582
      %v1728 = vpop.f32.mrf.mxu0
      %v1729 = vadd.f32 %v1516, %v1728
      %v1730 = vpop.f32.mrf.mxu0
      %v1731 = vpop.f32.mrf.mxu0
      %v1732 = vadd.f32 %v1516, %v1731
      %v1733 = vpop.f32.mrf.mxu0
      %1734 = vmatprep.mubr.bf16.mxu0 0
      %1735 = vmatmul.mubr.bf16.gmra.mxu0 %v1585
      %v1736 = vpop.f32.mrf.mxu0
      %v1737 = vadd.f32 %v1516, %v1736
      %v1738 = vpop.f32.mrf.mxu0
      %v1739 = vpop.f32.mrf.mxu0
      %v1740 = vadd.f32 %v1516, %v1739
      %v1741 = vpop.f32.mrf.mxu0
      %1742 = vmatprep.mubr.bf16.mxu0 0
      %1743 = vmatmul.mubr.bf16.gmra.mxu0 %v1588
      %v1744 = vpop.f32.mrf.mxu0
      %v1745 = vadd.f32 %v1516, %v1744
      %v1746 = vpop.f32.mrf.mxu0
      %v1747 = vpop.f32.mrf.mxu0
      %v1748 = vadd.f32 %v1516, %v1747
      %v1749 = vpop.f32.mrf.mxu0
      %1750 = vdwg.mxu0
      %v1751 = vmax.f32 %v1625, 0.0
      %v1752 = vmax.f32 %v1628, 0.0
      %v1753 = vmax.f32 %v1633, 0.0
      %v1754 = vmax.f32 %v1636, 0.0
      %v1755 = vmax.f32 %v1641, 0.0
      %v1756 = vmax.f32 %v1644, 0.0
      %v1757 = vmax.f32 %v1649, 0.0
      %v1758 = vmax.f32 %v1652, 0.0
      %v1759 = vmax.f32 %v1657, 0.0
      %v1760 = vmax.f32 %v1660, 0.0
      %v1761 = vmax.f32 %v1665, 0.0
      %v1762 = vmax.f32 %v1668, 0.0
      %v1763 = vmax.f32 %v1673, 0.0
      %v1764 = vmax.f32 %v1676, 0.0
      %v1765 = vmax.f32 %v1681, 0.0
      %v1766 = vmax.f32 %v1684, 0.0
      %v1767 = vmax.f32 %v1689, 0.0
      %v1768 = vmax.f32 %v1692, 0.0
      %v1769 = vmax.f32 %v1697, 0.0
      %v1770 = vmax.f32 %v1700, 0.0
      %v1771 = vmax.f32 %v1705, 0.0
      %v1772 = vmax.f32 %v1708, 0.0
      %v1773 = vmax.f32 %v1713, 0.0
      %v1774 = vmax.f32 %v1716, 0.0
      %v1775 = vmax.f32 %v1721, 0.0
      %v1776 = vmax.f32 %v1724, 0.0
      %v1777 = vmax.f32 %v1729, 0.0
      %v1778 = vmax.f32 %v1732, 0.0
      %v1779 = vmax.f32 %v1737, 0.0
      %v1780 = vmax.f32 %v1740, 0.0
      %v1781 = vmax.f32 %v1745, 0.0
      %v1782 = vmax.f32 %v1748, 0.0
      %v1783 = vpack.c.bf16 %v1752, %v1751
      %v1784 = vpack.c.bf16 %v1754, %v1753
      %v1785 = vpack.c.bf16 %v1756, %v1755
      %v1786 = vpack.c.bf16 %v1758, %v1757
      %v1787 = vpack.c.bf16 %v1760, %v1759
      %v1788 = vpack.c.bf16 %v1762, %v1761
      %v1789 = vpack.c.bf16 %v1764, %v1763
      %v1790 = vpack.c.bf16 %v1766, %v1765
      %v1791 = vpack.c.bf16 %v1768, %v1767
      %v1792 = vpack.c.bf16 %v1770, %v1769
      %v1793 = vpack.c.bf16 %v1772, %v1771
      %v1794 = vpack.c.bf16 %v1774, %v1773
      %v1795 = vpack.c.bf16 %v1776, %v1775
      %v1796 = vpack.c.bf16 %v1778, %v1777
      %v1797 = vpack.c.bf16 %v1780, %v1779
      %v1798 = vpack.c.bf16 %v1782, %v1781
      %v1800 = vlaneseq
      %v1801 = vshrl.u32 %v1800, 7
      %v1802 = vsub.s32 0, %v1801
      %v1803 = vrot.slane %v509, %v1802
      %v1813 = vunpack.c.l.b16 %v501
      %v1814 = vunpack.c.l.b16 %v502
      %v1815 = vunpack.c.l.b16 %v503
      %v1816 = vunpack.c.l.b16 %v504
      %v1817 = vunpack.c.l.b16 %v505
      %v1818 = vunpack.c.l.b16 %v506
      %v1819 = vunpack.c.l.b16 %v507
      %v1820 = vunpack.c.l.b16 %v508
      %v1821 = vpack.c.b16 %v1814, %v1813
      %v1822 = vpack.c.b16 %v1816, %v1815
      %v1823 = vpack.c.b16 %v1818, %v1817
      %v1824 = vpack.c.b16 %v1820, %v1819
      %v1830 = vsel %vm1216, %v1783, 0
      %v1833 = vsel %vm1216, %v1784, 0
      %v1836 = vsel %vm1216, %v1785, 0
      %v1839 = vsel %vm1216, %v1786, 0
      %v1842 = vsel %vm1216, %v1787, 0
      %v1845 = vsel %vm1216, %v1788, 0
      %v1848 = vsel %vm1216, %v1789, 0
      %v1851 = vsel %vm1216, %v1790, 0
      %v1854 = vsel %vm1216, %v1791, 0
      %v1857 = vsel %vm1216, %v1792, 0
      %v1860 = vsel %vm1216, %v1793, 0
      %v1863 = vsel %vm1216, %v1794, 0
      %v1866 = vsel %vm1216, %v1795, 0
      %v1869 = vsel %vm1216, %v1796, 0
      %v1872 = vsel %vm1216, %v1797, 0
      %v1875 = vsel %vm1216, %v1798, 0
      %1877 = vmatprep.subr.bf16.mxu0 0
      %1878 = vmatpush1.bf16.msra.mxu0 0
      %1879 = vmatprep.subr.bf16.mxu0 0
      %1880 = vmatpush1.bf16.msra.mxu0 0
      %1881 = vmatprep.subr.bf16.mxu0 0
      %1882 = vmatpush1.bf16.msra.mxu0 0
      %1883 = vmatprep.subr.bf16.mxu0 0
      %1884 = vmatpush1.bf16.msra.mxu0 0
      %1885 = vmatprep.subr.bf16.mxu0 0
      %1886 = vmatpush1.bf16.msra.mxu0 %v1824
      %1887 = vmatprep.subr.bf16.mxu0 0
      %1888 = vmatpush1.bf16.msra.mxu0 %v1823
      %1889 = vmatprep.subr.bf16.mxu0 0
      %1890 = vmatpush1.bf16.msra.mxu0 %v1822
      %1891 = vmatprep.subr.bf16.mxu0 0
      %1892 = vmatpush1.bf16.msra.mxu0 %v1821
      %1893 = vmatprep.subr.bf16.mxu0 0
      %1894 = vmatpush2.bf16.msra.mxu0 0
      %1895 = vmatprep.subr.bf16.mxu0 0
      %1896 = vmatpush2.bf16.msra.mxu0 0
      %1897 = vmatprep.subr.bf16.mxu0 0
      %1898 = vmatpush2.bf16.msra.mxu0 0
      %1899 = vmatprep.subr.bf16.mxu0 0
      %1900 = vmatpush2.bf16.msra.mxu0 0
      %1901 = vmatprep.subr.bf16.mxu0 0
      %1902 = vmatpush2.bf16.msra.mxu0 0
      %1903 = vmatprep.subr.bf16.mxu0 0
      %1904 = vmatpush2.bf16.msra.mxu0 0
      %1905 = vmatprep.subr.bf16.mxu0 0
      %1906 = vmatpush2.bf16.msra.mxu0 0
      %1907 = vmatprep.subr.bf16.mxu0 0
      %1908 = vmatpush2.bf16.msra.mxu0 0
      %1909 = vmatprep.mubr.bf16.mxu0 0
      %1910 = vmatmul.mubr.bf16.gmra.mxu0 %v1830
      %v1911 = vpop.f32.mrf.mxu0
      %v1912 = vadd.f32 %v1803, %v1911
      %v1913 = vpop.f32.mrf.mxu0
      %v1914 = vpop.f32.mrf.mxu0
      %v1915 = vadd.f32 %v1803, %v1914
      %v1916 = vpop.f32.mrf.mxu0
      %1917 = vmatprep.mubr.bf16.mxu0 0
      %1918 = vmatmul.mubr.bf16.gmra.mxu0 %v1833
      %v1919 = vpop.f32.mrf.mxu0
      %v1920 = vadd.f32 %v1803, %v1919
      %v1921 = vpop.f32.mrf.mxu0
      %v1922 = vpop.f32.mrf.mxu0
      %v1923 = vadd.f32 %v1803, %v1922
      %v1924 = vpop.f32.mrf.mxu0
      %1925 = vmatprep.mubr.bf16.mxu0 0
      %1926 = vmatmul.mubr.bf16.gmra.mxu0 %v1836
      %v1927 = vpop.f32.mrf.mxu0
      %v1928 = vadd.f32 %v1803, %v1927
      %v1929 = vpop.f32.mrf.mxu0
      %v1930 = vpop.f32.mrf.mxu0
      %v1931 = vadd.f32 %v1803, %v1930
      %v1932 = vpop.f32.mrf.mxu0
      %1933 = vmatprep.mubr.bf16.mxu0 0
      %1934 = vmatmul.mubr.bf16.gmra.mxu0 %v1839
      %v1935 = vpop.f32.mrf.mxu0
      %v1936 = vadd.f32 %v1803, %v1935
      %v1937 = vpop.f32.mrf.mxu0
      %v1938 = vpop.f32.mrf.mxu0
      %v1939 = vadd.f32 %v1803, %v1938
      %v1940 = vpop.f32.mrf.mxu0
      %1941 = vmatprep.mubr.bf16.mxu0 0
      %1942 = vmatmul.mubr.bf16.gmra.mxu0 %v1842
      %v1943 = vpop.f32.mrf.mxu0
      %v1944 = vadd.f32 %v1803, %v1943
      %v1945 = vpop.f32.mrf.mxu0
      %v1946 = vpop.f32.mrf.mxu0
      %v1947 = vadd.f32 %v1803, %v1946
      %v1948 = vpop.f32.mrf.mxu0
      %1949 = vmatprep.mubr.bf16.mxu0 0
      %1950 = vmatmul.mubr.bf16.gmra.mxu0 %v1845
      %v1951 = vpop.f32.mrf.mxu0
      %v1952 = vadd.f32 %v1803, %v1951
      %v1953 = vpop.f32.mrf.mxu0
      %v1954 = vpop.f32.mrf.mxu0
      %v1955 = vadd.f32 %v1803, %v1954
      %v1956 = vpop.f32.mrf.mxu0
      %1957 = vmatprep.mubr.bf16.mxu0 0
      %1958 = vmatmul.mubr.bf16.gmra.mxu0 %v1848
      %v1959 = vpop.f32.mrf.mxu0
      %v1960 = vadd.f32 %v1803, %v1959
      %v1961 = vpop.f32.mrf.mxu0
      %v1962 = vpop.f32.mrf.mxu0
      %v1963 = vadd.f32 %v1803, %v1962
      %v1964 = vpop.f32.mrf.mxu0
      %1965 = vmatprep.mubr.bf16.mxu0 0
      %1966 = vmatmul.mubr.bf16.gmra.mxu0 %v1851
      %v1967 = vpop.f32.mrf.mxu0
      %v1968 = vadd.f32 %v1803, %v1967
      %v1969 = vpop.f32.mrf.mxu0
      %v1970 = vpop.f32.mrf.mxu0
      %v1971 = vadd.f32 %v1803, %v1970
      %v1972 = vpop.f32.mrf.mxu0
      %1973 = vmatprep.mubr.bf16.mxu0 0
      %1974 = vmatmul.mubr.bf16.gmra.mxu0 %v1854
      %v1975 = vpop.f32.mrf.mxu0
      %v1976 = vadd.f32 %v1803, %v1975
      %v1977 = vpop.f32.mrf.mxu0
      %v1978 = vpop.f32.mrf.mxu0
      %v1979 = vadd.f32 %v1803, %v1978
      %v1980 = vpop.f32.mrf.mxu0
      %1981 = vmatprep.mubr.bf16.mxu0 0
      %1982 = vmatmul.mubr.bf16.gmra.mxu0 %v1857
      %v1983 = vpop.f32.mrf.mxu0
      %v1984 = vadd.f32 %v1803, %v1983
      %v1985 = vpop.f32.mrf.mxu0
      %v1986 = vpop.f32.mrf.mxu0
      %v1987 = vadd.f32 %v1803, %v1986
      %v1988 = vpop.f32.mrf.mxu0
      %1989 = vmatprep.mubr.bf16.mxu0 0
      %1990 = vmatmul.mubr.bf16.gmra.mxu0 %v1860
      %v1991 = vpop.f32.mrf.mxu0
      %v1992 = vadd.f32 %v1803, %v1991
      %v1993 = vpop.f32.mrf.mxu0
      %v1994 = vpop.f32.mrf.mxu0
      %v1995 = vadd.f32 %v1803, %v1994
      %v1996 = vpop.f32.mrf.mxu0
      %1997 = vmatprep.mubr.bf16.mxu0 0
      %1998 = vmatmul.mubr.bf16.gmra.mxu0 %v1863
      %v1999 = vpop.f32.mrf.mxu0
      %v2000 = vadd.f32 %v1803, %v1999
      %v2001 = vpop.f32.mrf.mxu0
      %v2002 = vpop.f32.mrf.mxu0
      %v2003 = vadd.f32 %v1803, %v2002
      %v2004 = vpop.f32.mrf.mxu0
      %2005 = vmatprep.mubr.bf16.mxu0 0
      %2006 = vmatmul.mubr.bf16.gmra.mxu0 %v1866
      %v2007 = vpop.f32.mrf.mxu0
      %v2008 = vadd.f32 %v1803, %v2007
      %v2009 = vpop.f32.mrf.mxu0
      %v2010 = vpop.f32.mrf.mxu0
      %v2011 = vadd.f32 %v1803, %v2010
      %v2012 = vpop.f32.mrf.mxu0
      %2013 = vmatprep.mubr.bf16.mxu0 0
      %2014 = vmatmul.mubr.bf16.gmra.mxu0 %v1869
      %v2015 = vpop.f32.mrf.mxu0
      %v2016 = vadd.f32 %v1803, %v2015
      %v2017 = vpop.f32.mrf.mxu0
      %v2018 = vpop.f32.mrf.mxu0
      %v2019 = vadd.f32 %v1803, %v2018
      %v2020 = vpop.f32.mrf.mxu0
      %2021 = vmatprep.mubr.bf16.mxu0 0
      %2022 = vmatmul.mubr.bf16.gmra.mxu0 %v1872
      %v2023 = vpop.f32.mrf.mxu0
      %v2024 = vadd.f32 %v1803, %v2023
      %v2025 = vpop.f32.mrf.mxu0
      %v2026 = vpop.f32.mrf.mxu0
      %v2027 = vadd.f32 %v1803, %v2026
      %v2028 = vpop.f32.mrf.mxu0
      %2029 = vmatprep.mubr.bf16.mxu0 0
      %2030 = vmatmul.mubr.bf16.gmra.mxu0 %v1875
      %v2031 = vpop.f32.mrf.mxu0
      %v2032 = vadd.f32 %v1803, %v2031
      %v2033 = vpop.f32.mrf.mxu0
      %v2034 = vpop.f32.mrf.mxu0
      %v2035 = vadd.f32 %v1803, %v2034
      %v2036 = vpop.f32.mrf.mxu0
      %2037 = vdwg.mxu0
      %v2038 = vmax.f32 %v1912, 0.0
      %v2039 = vmax.f32 %v1915, 0.0
      %v2040 = vmax.f32 %v1920, 0.0
      %v2041 = vmax.f32 %v1923, 0.0
      %v2042 = vmax.f32 %v1928, 0.0
      %v2043 = vmax.f32 %v1931, 0.0
      %v2044 = vmax.f32 %v1936, 0.0
      %v2045 = vmax.f32 %v1939, 0.0
      %v2046 = vmax.f32 %v1944, 0.0
      %v2047 = vmax.f32 %v1947, 0.0
      %v2048 = vmax.f32 %v1952, 0.0
      %v2049 = vmax.f32 %v1955, 0.0
      %v2050 = vmax.f32 %v1960, 0.0
      %v2051 = vmax.f32 %v1963, 0.0
      %v2052 = vmax.f32 %v1968, 0.0
      %v2053 = vmax.f32 %v1971, 0.0
      %v2054 = vmax.f32 %v1976, 0.0
      %v2055 = vmax.f32 %v1979, 0.0
      %v2056 = vmax.f32 %v1984, 0.0
      %v2057 = vmax.f32 %v1987, 0.0
      %v2058 = vmax.f32 %v1992, 0.0
      %v2059 = vmax.f32 %v1995, 0.0
      %v2060 = vmax.f32 %v2000, 0.0
      %v2061 = vmax.f32 %v2003, 0.0
      %v2062 = vmax.f32 %v2008, 0.0
      %v2063 = vmax.f32 %v2011, 0.0
      %v2064 = vmax.f32 %v2016, 0.0
      %v2065 = vmax.f32 %v2019, 0.0
      %v2066 = vmax.f32 %v2024, 0.0
      %v2067 = vmax.f32 %v2027, 0.0
      %v2068 = vmax.f32 %v2032, 0.0
      %v2069 = vmax.f32 %v2035, 0.0
      %v2070 = vpack.c.bf16 %v2039, %v2038
      %v2071 = vpack.c.bf16 %v2041, %v2040
      %v2072 = vpack.c.bf16 %v2043, %v2042
      %v2073 = vpack.c.bf16 %v2045, %v2044
      %v2074 = vpack.c.bf16 %v2047, %v2046
      %v2075 = vpack.c.bf16 %v2049, %v2048
      %v2076 = vpack.c.bf16 %v2051, %v2050
      %v2077 = vpack.c.bf16 %v2053, %v2052
      %v2078 = vpack.c.bf16 %v2055, %v2054
      %v2079 = vpack.c.bf16 %v2057, %v2056
      %v2080 = vpack.c.bf16 %v2059, %v2058
      %v2081 = vpack.c.bf16 %v2061, %v2060
      %v2082 = vpack.c.bf16 %v2063, %v2062
      %v2083 = vpack.c.bf16 %v2065, %v2064
      %v2084 = vpack.c.bf16 %v2067, %v2066
      %v2085 = vpack.c.bf16 %v2069, %v2068
      %v2102 = vunpack.c.l.b16 %v2070
      %v2103 = vunpack.c.h.b16 %v2070
      %v2104 = vunpack.c.l.b16 %v2071
      %v2105 = vunpack.c.h.b16 %v2071
      %v2106 = vunpack.c.l.b16 %v2072
      %v2107 = vunpack.c.h.b16 %v2072
      %v2108 = vunpack.c.l.b16 %v2073
      %v2109 = vunpack.c.h.b16 %v2073
      %v2110 = vunpack.c.l.b16 %v2074
      %v2111 = vunpack.c.h.b16 %v2074
      %v2112 = vunpack.c.l.b16 %v2075
      %v2113 = vunpack.c.h.b16 %v2075
      %v2114 = vunpack.c.l.b16 %v2076
      %v2115 = vunpack.c.h.b16 %v2076
      %v2116 = vunpack.c.l.b16 %v2077
      %v2117 = vunpack.c.h.b16 %v2077
      %v2118 = vunpack.c.l.b16 %v2078
      %v2119 = vunpack.c.h.b16 %v2078
      %v2120 = vunpack.c.l.b16 %v2079
      %v2121 = vunpack.c.h.b16 %v2079
      %v2122 = vunpack.c.l.b16 %v2080
      %v2123 = vunpack.c.h.b16 %v2080
      %v2124 = vunpack.c.l.b16 %v2081
      %v2125 = vunpack.c.h.b16 %v2081
      %v2126 = vunpack.c.l.b16 %v2082
      %v2127 = vunpack.c.h.b16 %v2082
      %v2128 = vunpack.c.l.b16 %v2083
      %v2129 = vunpack.c.h.b16 %v2083
      %v2130 = vunpack.c.l.b16 %v2084
      %v2131 = vunpack.c.h.b16 %v2084
      %v2132 = vunpack.c.l.b16 %v2085
      %v2133 = vunpack.c.h.b16 %v2085
      %v2134 = vpack.c.b16 %v2102, %v2102
      %v2135 = vpack.c.b16 %v2103, %v2103
      %v2136 = vpack.c.b16 %v2104, %v2104
      %v2137 = vpack.c.b16 %v2105, %v2105
      %v2138 = vpack.c.b16 %v2106, %v2106
      %v2139 = vpack.c.b16 %v2107, %v2107
      %v2140 = vpack.c.b16 %v2108, %v2108
      %v2141 = vpack.c.b16 %v2109, %v2109
      %v2142 = vpack.c.b16 %v2110, %v2110
      %v2143 = vpack.c.b16 %v2111, %v2111
      %v2144 = vpack.c.b16 %v2112, %v2112
      %v2145 = vpack.c.b16 %v2113, %v2113
      %v2146 = vpack.c.b16 %v2114, %v2114
      %v2147 = vpack.c.b16 %v2115, %v2115
      %v2148 = vpack.c.b16 %v2116, %v2116
      %v2149 = vpack.c.b16 %v2117, %v2117
      %v2150 = vpack.c.b16 %v2118, %v2118
      %v2151 = vpack.c.b16 %v2119, %v2119
      %v2152 = vpack.c.b16 %v2120, %v2120
      %v2153 = vpack.c.b16 %v2121, %v2121
      %v2154 = vpack.c.b16 %v2122, %v2122
      %v2155 = vpack.c.b16 %v2123, %v2123
      %v2156 = vpack.c.b16 %v2124, %v2124
      %v2157 = vpack.c.b16 %v2125, %v2125
      %v2158 = vpack.c.b16 %v2126, %v2126
      %v2159 = vpack.c.b16 %v2127, %v2127
      %v2160 = vpack.c.b16 %v2128, %v2128
      %v2161 = vpack.c.b16 %v2129, %v2129
      %v2162 = vpack.c.b16 %v2130, %v2130
      %v2163 = vpack.c.b16 %v2131, %v2131
      %v2164 = vpack.c.b16 %v2132, %v2132
      %v2165 = vpack.c.b16 %v2133, %v2133
      %vm2198 = vcmask 519168
      %2199 = vst.msk [vmem:[%s410] sm:$0xf] %vm2198, %v2134
      %2200 = vst.msk [vmem:[%s410 + $0x4] sm:$0xf] %vm2198, %v2135
      %2201 = vst.msk [vmem:[%s410 + $0x8] sm:$0xf] %vm2198, %v2136
      %2202 = vst.msk [vmem:[%s410 + $0xc] sm:$0xf] %vm2198, %v2137
      %2203 = vst.msk [vmem:[%s410 + $0x10] sm:$0xf] %vm2198, %v2138
      %2204 = vst.msk [vmem:[%s410 + $0x14] sm:$0xf] %vm2198, %v2139
      %2205 = vst.msk [vmem:[%s410 + $0x18] sm:$0xf] %vm2198, %v2140
      %2206 = vst.msk [vmem:[%s410 + $0x1c] sm:$0xf] %vm2198, %v2141
      %2207 = vst.msk [vmem:[%s410 + $0x20] sm:$0xf] %vm2198, %v2142
      %2208 = vst.msk [vmem:[%s410 + $0x24] sm:$0xf] %vm2198, %v2143
      %2209 = vst.msk [vmem:[%s410 + $0x28] sm:$0xf] %vm2198, %v2144
      %2210 = vst.msk [vmem:[%s410 + $0x2c] sm:$0xf] %vm2198, %v2145
      %2211 = vst.msk [vmem:[%s410 + $0x30] sm:$0xf] %vm2198, %v2146
      %2212 = vst.msk [vmem:[%s410 + $0x34] sm:$0xf] %vm2198, %v2147
      %2213 = vst.msk [vmem:[%s410 + $0x38] sm:$0xf] %vm2198, %v2148
      %2214 = vst.msk [vmem:[%s410 + $0x3c] sm:$0xf] %vm2198, %v2149
      %2215 = vst.msk [vmem:[%s410 + $0x40] sm:$0xf] %vm2198, %v2150
      %2216 = vst.msk [vmem:[%s410 + $0x44] sm:$0xf] %vm2198, %v2151
      %2217 = vst.msk [vmem:[%s410 + $0x48] sm:$0xf] %vm2198, %v2152
      %2218 = vst.msk [vmem:[%s410 + $0x4c] sm:$0xf] %vm2198, %v2153
      %2219 = vst.msk [vmem:[%s410 + $0x50] sm:$0xf] %vm2198, %v2154
      %2220 = vst.msk [vmem:[%s410 + $0x54] sm:$0xf] %vm2198, %v2155
      %2221 = vst.msk [vmem:[%s410 + $0x58] sm:$0xf] %vm2198, %v2156
      %2222 = vst.msk [vmem:[%s410 + $0x5c] sm:$0xf] %vm2198, %v2157
      %2223 = vst.msk [vmem:[%s410 + $0x60] sm:$0xf] %vm2198, %v2158
      %2224 = vst.msk [vmem:[%s410 + $0x64] sm:$0xf] %vm2198, %v2159
      %2225 = vst.msk [vmem:[%s410 + $0x68] sm:$0xf] %vm2198, %v2160
      %2226 = vst.msk [vmem:[%s410 + $0x6c] sm:$0xf] %vm2198, %v2161
      %2227 = vst.msk [vmem:[%s410 + $0x70] sm:$0xf] %vm2198, %v2162
      %2228 = vst.msk [vmem:[%s410 + $0x74] sm:$0xf] %vm2198, %v2163
      %2229 = vst.msk [vmem:[%s410 + $0x78] sm:$0xf] %vm2198, %v2164
      %2230 = vst.msk [vmem:[%s410 + $0x7c] sm:$0xf] %vm2198, %v2165
      %s2231 = smul.u32 32, %s22
      %p2232 = scmp.lt.s32.totalorder %s2231, 63
      %s2233 = scalar_select %p2232, %s2231, 63
      %s2234 = smul.addr %s2233, 4
      %s2235 = scalar_lea.vmem %s11, %s2234
      // Predicated region
      $region65: #{tpu_custom_call.1} parent=63 // pred_check
        %p2236 = pneg %p281
      $region66: #{tpu_custom_call.1} parent=63 // pred_check_branch
        %2238 = sbr.rel (%p2236) target = $region68
      $region67: #{tpu_custom_call.1} parent=63 // pred_region
        %s2239 = smul.u32 32, %s22
      $region68: #{tpu_custom_call.1} parent=63 // pred_fallthru
        _
    $region64: #{tpu_custom_call.1} parent=5 // pred_fallthru
      _
    %p2240 = scmp.le.s32.totalorder 2, %s17
    // Predicated region
    $region69: #{tpu_custom_call.1} parent=5 // pred_check
      %p2241 = pneg %p2240
    $region70: #{tpu_custom_call.1} parent=5 // pred_check_branch
      %2243 = sbr.rel (%p2241) target = $region72
    $region71: #{tpu_custom_call.1} parent=5 // pred_region
      %s2244 = ssub.s32 %s17, 2
      // Predicated region
      $region73: #{tpu_custom_call.1} parent=71 // pred_check
        %p2245 = pneg %p287
      $region74: #{tpu_custom_call.1} parent=71 // pred_check_branch
        %2247 = sbr.rel (%p2245) target = $region76
      $region75: #{tpu_custom_call.1} parent=71 // pred_region
        %s2248 = smul.u32 32, %s23
        %p2249 = scmp.lt.s32.totalorder %s2248, 63
        %s2250 = scalar_select %p2249, %s2248, 63
        %s2251 = smul.addr %s2250, 4
        %s2252 = scalar_lea.vmem %s11, %s2251
      $region76: #{tpu_custom_call.1} parent=71 // pred_fallthru
        _
    $region72: #{tpu_custom_call.1} parent=5 // pred_fallthru
      _
  $region6: #{tpu_custom_call.1} parent=0 // loop_footer
    %s21 = sadd.s32 1, %s17
  $region7: #{tpu_custom_call.1} parent=0 // loop_footer_branch
    %16 = sbr.rel target = $region3
  $region8: #{tpu_custom_call.1} parent=0 // loop_exit
    _

</llo_original>
